<compile_context>
chip_gen: v6e
topology: v6e:2x2x1
jax: 0.10.0
libtpu: 0.0.40
codegen_flags: <defaults>
</compile_context>

<pallas_src>
import functools
import math

import jax
import jax.numpy as jnp
from jax.experimental import pallas as pl
from jax.experimental.pallas import tpu as pltpu

N_BINS = 11
N_CHANNELS = 128
MU = (1.0, 0.9, 0.7, 0.5, 0.3, 0.1, -0.1, -0.3, -0.5, -0.7, -0.9)
SIGMA = (1e-3,) + (0.1,) * 10
# query-gram/doc-gram combination order of the reference: uu,ut,ub,bu,tu,bb,bt,tb,tt
COMBOS = ((0, 0), (0, 2), (0, 1), (1, 0), (2, 0), (1, 1), (1, 2), (2, 1), (2, 2))

# Gaussian-chain constants for the 10 shared-sigma (0.1) bins:
#   E_b(s) = exp(-(s - mu_b)^2 / (2 * 0.1^2)),  mu_b = 0.9 - 0.2*b
#   E_b    = E_0 * R^b * K_b   with  R = exp(-20*s),  K_b = exp(18*b - 2*b^2)
# -> only 3 exps per sim tile (exact-match bin, E_0, R) instead of 11.
# Valid/stable because sim in [0, 1] (non-negative L2-normalized vectors).
_B0_COEF = -1.0 / (2.0 * SIGMA[0] ** 2)      # exact-match bin (sigma = 1e-3)
_E0_COEF = -1.0 / (2.0 * 0.1 ** 2)           # -50
_R_COEF = -0.2 / (0.1 ** 2)                  # -20
_KB = tuple(math.exp(18.0 * b - 2.0 * b * b) for b in range(10))


def _round_up(x, m):
    return (x + m - 1) // m * m


# ---------------- fused conv + ReLU + L2-norm + 9-combo Gaussian pooling ----------------

def _cknrm_fused_kernel(emb_ref, wa_ref, wb_ref, wc_ref, b_ref, wq_ref, md_ref,
                        o_ref, *, bblk, lqp, ldp, c):
    # emb_ref: (bblk, R+8, D)  query rows [0:lqp] then doc rows [lqp:lqp+ldp], zero pad
    # wa_ref : (D, 3C) = [W_uni | W_bi_tap0 | W_tri_tap0]
    # wb_ref : (D, 2C) = [W_bi_tap1 | W_tri_tap1]
    # wc_ref : (D, C)  =  W_tri_tap2
    # b_ref  : (3, C)  biases (uni, bi, tri)
    # wq_ref : (bblk, 3, 3*lqp) block-diag  0.01 * query_mask * attn_k
    # md_ref : (bblk, 3*ldp, 3) block-diag  doc_mask_k
    # o_ref  : (bblk, 3, 33)    result[qi, 3*bin + dj]
    r_rows = lqp + ldp

    def one_batch(i):
        # shifted row views come from the +8 zero-padded block (no resident copy)
        x0 = emb_ref[i, 0:r_rows, :]
        x1 = emb_ref[i, 1:r_rows + 1, :]
        x2 = emb_ref[i, 2:r_rows + 2, :]

        # 3 shift-grouped wide MXU pushes (instead of 6 narrow ones)
        y0 = jnp.dot(x0, wa_ref[...], preferred_element_type=jnp.float32)   # (R, 3C)
        y1 = jnp.dot(x1, wb_ref[...], preferred_element_type=jnp.float32)   # (R, 2C)
        y2 = jnp.dot(x2, wc_ref[...], preferred_element_type=jnp.float32)   # (R, C)
        y_uni = y0[:, 0:c] + b_ref[0:1, :]
        y_bi = y0[:, c:2 * c] + y1[:, 0:c] + b_ref[1:2, :]
        y_tri = y0[:, 2 * c:3 * c] + y1[:, c:2 * c] + y2 + b_ref[2:3, :]

        # stack grams along sublanes: rows [0:lqp]=uni, [lqp:2lqp]=bi, [2lqp:3lqp]=tri
        qs = jnp.concatenate([y_uni[0:lqp], y_bi[0:lqp], y_tri[0:lqp]], axis=0)
        ds = jnp.concatenate([y_uni[lqp:r_rows], y_bi[lqp:r_rows],
                              y_tri[lqp:r_rows]], axis=0)

        def relu_norm(y):
            # Conv -> ReLU -> +1e-9 -> F.normalize(p=2, eps=1e-10)
            y = jnp.maximum(y, 0.0) + 1e-9
            inv = jax.lax.rsqrt(
                jnp.maximum(jnp.sum(y * y, axis=1, keepdims=True), 1e-20))
            return y * inv

        qs = relu_norm(qs)                                    # (3*lqp, C)
        ds = relu_norm(ds)                                    # (3*ldp, C)

        # all 9 combos with one MXU matmul; sim in [0, 1]
        sim = jax.lax.dot_general(qs, ds, (((1,), (1,)), ((), ())),
                                  preferred_element_type=jnp.float32)  # (3lqp, 3ldp)

        md = md_ref[i]                                        # (3*ldp, 3) block-diag mask
        # 11 Gaussian bins from 3 exps; doc mask + per-doc-gram reduction folded
        # into the block-diag matmul.
        b0 = jnp.exp((sim - MU[0]) ** 2 * _B0_COEF)           # exact-match bin
        acc = jnp.exp((sim - MU[1]) ** 2 * _E0_COEF)          # E_0 (mu = 0.9)
        rr = jnp.exp(sim * _R_COEF)                           # chain ratio
        cols = [jnp.dot(b0, md, preferred_element_type=jnp.float32),
                jnp.dot(acc, md, preferred_element_type=jnp.float32)]
        for bb in range(1, 10):
            acc = acc * rr                                    # E_0 * R^b
            cols.append(jnp.dot(acc, md, preferred_element_type=jnp.float32) * _KB[bb])
        p = jnp.concatenate(cols, axis=1)                     # (3*lqp, 33), col = 3*bin+dj
        logp = jnp.log(jnp.maximum(p, 1e-10))                 # single log over pooled tile

        # query mask*attn*0.01 + per-q-gram row reduction folded into one matmul
        wq = wq_ref[i]                                        # (3, 3*lqp) block-diag
        o_ref[i] = jnp.dot(wq, logp, preferred_element_type=jnp.float32)  # (3, 33)

    if bblk == 1:
        one_batch(0)
    else:
        def body(i, carry):
            one_batch(i)
            return carry
        jax.lax.fori_loop(0, bblk, body, 0)


def cknrm_pooled(emb, w_a, w_b, w_c, b_cat, wq_blk, md_blk, *, bblk, lqp, ldp):
    """Runs the fused kernel. Returns (B_pad, 3, 33) with entry [b, qi, 3*bin+dj]."""
    b_pad, rows, d = emb.shape
    c = N_CHANNELS
    kern = functools.partial(_cknrm_fused_kernel, bblk=bblk, lqp=lqp, ldp=ldp, c=c)
    return pl.pallas_call(
        kern,
        out_shape=jax.ShapeDtypeStruct((b_pad, 3, 3 * N_BINS), jnp.float32),
        grid=(b_pad // bblk,),
        in_specs=[
            pl.BlockSpec((bblk, rows, d), lambda g: (g, 0, 0)),      # per-step emb block
            pl.BlockSpec((d, 3 * c), lambda g: (0, 0)),              # resident weights
            pl.BlockSpec((d, 2 * c), lambda g: (0, 0)),
            pl.BlockSpec((d, c), lambda g: (0, 0)),
            pl.BlockSpec((3, c), lambda g: (0, 0)),                  # biases
            pl.BlockSpec((bblk, 3, 3 * lqp), lambda g: (g, 0, 0)),   # query mask weights
            pl.BlockSpec((bblk, 3 * ldp, 3), lambda g: (g, 0, 0)),   # doc mask weights
        ],
        out_specs=pl.BlockSpec((bblk, 3, 3 * N_BINS), lambda g: (g, 0, 0)),
        compiler_params=pltpu.CompilerParams(
            dimension_semantics=("parallel",),
            vmem_limit_bytes=32 * 1024 * 1024,
        ),
    )(emb, w_a, w_b, w_c, b_cat, wq_blk, md_blk)


# ---------------- plain-JAX glue ----------------

def init_params(key, vocab_size, d_word_vec, n_channels=N_CHANNELS):
    ks = jax.random.split(key, 16)
    p = {
        "wrd_emb": jax.random.normal(ks[0], (vocab_size, d_word_vec), jnp.float32) * 0.1,
        # TODO(synk): synthetic IDF table stands in for get_idf()/../data/idf.norm.tsv
        "attn_emb": jax.random.uniform(ks[1], (vocab_size, 1), jnp.float32, 0.1, 1.0),
        "conv_w": {}, "conv_b": {}, "attn_conv_w": {}, "attn_conv_b": {},
        "dense_w": jax.random.normal(ks[2], (1, N_BINS * 9), jnp.float32) * 0.1,
        "dense_b": jnp.zeros((1,), jnp.float32),
    }
    for i, k in enumerate((1, 2, 3)):
        # PyTorch Conv2d weight (C_out, 1, k, D) reshaped/transposed to (k*D, C_out)
        w = jax.random.normal(ks[3 + i], (n_channels, k * d_word_vec), jnp.float32) * 0.05
        p["conv_w"][k] = w.T
        p["conv_b"][k] = jax.random.normal(ks[6 + i], (n_channels,), jnp.float32) * 0.01
        p["attn_conv_w"][k] = jnp.abs(jax.random.normal(ks[9 + i], (k,), jnp.float32)) * 0.5 + 0.1
        p["attn_conv_b"][k] = jnp.float32(0.01)
    return p


def cknrm_forward(params, inputs_qwt, inputs_dwt, inputs_qwm, inputs_dwm, *, bblk=4):
    B, Lq = inputs_qwt.shape
    Ld = inputs_dwt.shape[1]
    D = params["wrd_emb"].shape[1]
    C = N_CHANNELS

    qw = params["wrd_emb"][inputs_qwt]                  # (B, Lq, D)
    dw = params["wrd_emb"][inputs_dwt]                  # (B, Ld, D)
    attn = params["attn_emb"][inputs_qwt][:, :, 0]      # (B, Lq) idf values

    # padded/sublane-aligned sequence lengths (masks zero the padding)
    Lqp = _round_up(Lq, 8)
    Ldp = _round_up(Ld, 8)
    R = Lqp + Ldp

    # batch blocking: amortize per-step overhead but keep grid >= 2 steps (v7x 2 TCs)
    bblk = max(1, min(bblk, B, pl.cdiv(B, 2)))
    B_pad = _round_up(B, bblk)

    # --- embedding block: query rows, then doc rows, +8 zero rows for shifted loads ---
    qw_p = jnp.pad(qw, ((0, B_pad - B), (0, Lqp - Lq), (0, 0)))
    dw_p = jnp.pad(dw, ((0, B_pad - B), (0, Ldp - Ld + 8), (0, 0)))
    emb = jnp.concatenate([qw_p, dw_p], axis=1)          # (B_pad, R+8, D)

    # --- shift-grouped conv weights ---
    W1, W2, W3 = params["conv_w"][1], params["conv_w"][2], params["conv_w"][3]
    w_a = jnp.concatenate([W1, W2[:D], W3[:D]], axis=1)            # (D, 3C)
    w_b = jnp.concatenate([W2[D:], W3[D:2 * D]], axis=1)           # (D, 2C)
    w_c = W3[2 * D:]                                               # (D, C)
    b_cat = jnp.stack([params["conv_b"][1], params["conv_b"][2],
                       params["conv_b"][3]], axis=0)               # (3, C)

    # --- attn_{uni,bi,tri}: Conv2d(1,1,(k,1)) + ReLU (tiny scalar conv, plain JAX) ---
    # masks past the last valid k-gram position are zeroed (replaces length truncation)
    attn_pad = jnp.pad(attn, ((0, 0), (0, 2)))
    q_pos = jnp.arange(Lq)[None, :]
    d_pos = jnp.arange(Ld)[None, :]
    wq_rows, md_cols = [], []
    for idx, k in enumerate((1, 2, 3)):
        wk = params["attn_conv_w"][k]
        ak = jnp.maximum(sum(attn_pad[:, t:t + Lq] * wk[t] for t in range(k))
                         + params["attn_conv_b"][k], 0.0)
        mqk = inputs_qwm * ak * (q_pos < (Lq - k + 1)).astype(jnp.float32) * 0.01
        mdk = inputs_dwm * (d_pos < (Ld - k + 1)).astype(jnp.float32)
        # block-diag placement: gram k occupies rows/cols [idx*Lp : idx*Lp + L]
        wq_rows.append(jnp.pad(mqk, ((0, B_pad - B),
                                     (idx * Lqp, (2 - idx) * Lqp + (Lqp - Lq)))))
        md_cols.append(jnp.pad(mdk, ((0, B_pad - B),
                                     (idx * Ldp, (2 - idx) * Ldp + (Ldp - Ld)))))
    wq_blk = jnp.stack(wq_rows, axis=1)                  # (B_pad, 3, 3*Lqp)
    md_blk = jnp.stack(md_cols, axis=2)                  # (B_pad, 3*Ldp, 3)

    # --- fused conv + pooling kernel ---
    pooled = cknrm_pooled(emb, w_a, w_b, w_c, b_cat, wq_blk, md_blk,
                          bblk=bblk, lqp=Lqp, ldp=Ldp)   # (B_pad, 3, 33)

    # reorder [qi, 3*bin + dj] -> reference combo order (uu,ut,ub,bu,tu,bb,bt,tb,tt)
    res_flat = pooled[:B].reshape(B, 3 * 3 * N_BINS)
    idx = jnp.array([qi * 3 * N_BINS + 3 * b + dj
                     for (qi, dj) in COMBOS for b in range(N_BINS)], jnp.int32)
    lps = res_flat[:, idx]                               # (B, 99)

    out = jnp.tanh(lps @ params["dense_w"].T + params["dense_b"])[:, 0]
    return out


if __name__ == "__main__":
    key = jax.random.PRNGKey(0)
    V, D = 64, 32          # vocab_size, d_word_vec
    B, Lq, Ld = 2, 8, 16   # batch, query len, doc len
    pkey, k1, k2 = jax.random.split(key, 3)
    params = init_params(pkey, V, D)

    inputs_qwt = jax.random.randint(k1, (B, Lq), 1, V)
    inputs_dwt = jax.random.randint(k2, (B, Ld), 1, V)
    q_lens = jnp.array([8, 6])
    d_lens = jnp.array([16, 12])
    inputs_qwm = (jnp.arange(Lq)[None, :] < q_lens[:, None]).astype(jnp.float32)
    inputs_dwm = (jnp.arange(Ld)[None, :] < d_lens[:, None]).astype(jnp.float32)

    fwd = jax.jit(cknrm_forward)
    out = fwd(params, inputs_qwt, inputs_dwt, inputs_qwm, inputs_dwm)
    jax.block_until_ready(out)
    assert out.shape == (B,)
    assert bool(jnp.all(jnp.isfinite(out)))
    print("KERNEL_OK")
</pallas_src>

<mosaic_0001>
module attributes {stable_mosaic.version = 11 : i64} {
  func.func @_cknrm_fused_kernel(%arg0: i32, %arg1: memref<1x32x32xf32, #tpu.memory_space<vmem>>, %arg2: memref<32x384xf32, #tpu.memory_space<vmem>>, %arg3: memref<32x256xf32, #tpu.memory_space<vmem>>, %arg4: memref<32x128xf32, #tpu.memory_space<vmem>>, %arg5: memref<3x128xf32, #tpu.memory_space<vmem>>, %arg6: memref<1x3x24xf32, #tpu.memory_space<vmem>>, %arg7: memref<1x48x3xf32, #tpu.memory_space<vmem>>, %arg8: memref<1x3x33xf32, #tpu.memory_space<vmem>>) attributes {dimension_semantics = [#tpu.dimension_semantics<parallel>], iteration_bounds = array<i64: 2>, scalar_prefetch = 0 : i64, scratch_operands = 0 : i64, tpu.core_type = #tpu.core_type<tc>, window_params = [{transform_indices = @transform_0, window_bounds = array<i64: 1, 32, 32>}, {pipeline_mode = #tpu.pipeline_mode<synchronous>, transform_indices = @transform_1, window_bounds = array<i64: 32, 384>}, {pipeline_mode = #tpu.pipeline_mode<synchronous>, transform_indices = @transform_2, window_bounds = array<i64: 32, 256>}, {pipeline_mode = #tpu.pipeline_mode<synchronous>, transform_indices = @transform_3, window_bounds = array<i64: 32, 128>}, {pipeline_mode = #tpu.pipeline_mode<synchronous>, transform_indices = @transform_4, window_bounds = array<i64: 3, 128>}, {transform_indices = @transform_5, window_bounds = array<i64: 1, 3, 24>}, {transform_indices = @transform_6, window_bounds = array<i64: 1, 48, 3>}, {transform_indices = @transform_7, window_bounds = array<i64: 1, 3, 33>}]} {
    %c0 = arith.constant 0 : index
    %c0_0 = arith.constant 0 : index
    %c0_1 = arith.constant 0 : index
    %0 = vector.load %arg1[%c0, %c0_0, %c0_1] : memref<1x32x32xf32, #tpu.memory_space<vmem>>, vector<1x24x32xf32>
    %1 = vector.shape_cast %0 : vector<1x24x32xf32> to vector<24x32xf32>
    %c0_2 = arith.constant 0 : index
    %c1 = arith.constant 1 : index
    %c0_3 = arith.constant 0 : index
    %2 = vector.load %arg1[%c0_2, %c1, %c0_3] : memref<1x32x32xf32, #tpu.memory_space<vmem>>, vector<1x24x32xf32>
    %3 = vector.shape_cast %2 : vector<1x24x32xf32> to vector<24x32xf32>
    %c0_4 = arith.constant 0 : index
    %c2 = arith.constant 2 : index
    %c0_5 = arith.constant 0 : index
    %4 = vector.load %arg1[%c0_4, %c2, %c0_5] : memref<1x32x32xf32, #tpu.memory_space<vmem>>, vector<1x24x32xf32>
    %5 = vector.shape_cast %4 : vector<1x24x32xf32> to vector<24x32xf32>
    %c0_6 = arith.constant 0 : index
    %c0_7 = arith.constant 0 : index
    %6 = vector.load %arg2[%c0_6, %c0_7] : memref<32x384xf32, #tpu.memory_space<vmem>>, vector<32x384xf32>
    %cst = arith.constant dense<0.000000e+00> : vector<24x384xf32>
    %7 = tpu.matmul %1, %6, %cst {dimension_numbers = #tpu.dot_dimension_numbers<[1], [0], [0], [1], [0, 0, 1, 1], [], []>} : vector<24x32xf32>, vector<32x384xf32>, vector<24x384xf32> -> vector<24x384xf32>
    %c0_8 = arith.constant 0 : index
    %c0_9 = arith.constant 0 : index
    %8 = vector.load %arg3[%c0_8, %c0_9] : memref<32x256xf32, #tpu.memory_space<vmem>>, vector<32x256xf32>
    %cst_10 = arith.constant dense<0.000000e+00> : vector<24x256xf32>
    %9 = tpu.matmul %3, %8, %cst_10 {dimension_numbers = #tpu.dot_dimension_numbers<[1], [0], [0], [1], [0, 0, 1, 1], [], []>} : vector<24x32xf32>, vector<32x256xf32>, vector<24x256xf32> -> vector<24x256xf32>
    %c0_11 = arith.constant 0 : index
    %c0_12 = arith.constant 0 : index
    %10 = vector.load %arg4[%c0_11, %c0_12] : memref<32x128xf32, #tpu.memory_space<vmem>>, vector<32x128xf32>
    %cst_13 = arith.constant dense<0.000000e+00> : vector<24x128xf32>
    %11 = tpu.matmul %5, %10, %cst_13 {dimension_numbers = #tpu.dot_dimension_numbers<[1], [0], [0], [1], [0, 0, 1, 1], [], []>} : vector<24x32xf32>, vector<32x128xf32>, vector<24x128xf32> -> vector<24x128xf32>
    %12 = vector.extract_strided_slice %7 {offsets = [0, 0], sizes = [24, 128], strides = [1, 1]} : vector<24x384xf32> to vector<24x128xf32>
    %c0_14 = arith.constant 0 : index
    %c0_15 = arith.constant 0 : index
    %13 = vector.load %arg5[%c0_14, %c0_15] : memref<3x128xf32, #tpu.memory_space<vmem>>, vector<1x128xf32>
    %14 = vector.broadcast %13 : vector<1x128xf32> to vector<24x128xf32>
    %15 = arith.addf %12, %14 : vector<24x128xf32>
    %16 = vector.extract_strided_slice %7 {offsets = [0, 128], sizes = [24, 128], strides = [1, 1]} : vector<24x384xf32> to vector<24x128xf32>
    %17 = vector.extract_strided_slice %9 {offsets = [0, 0], sizes = [24, 128], strides = [1, 1]} : vector<24x256xf32> to vector<24x128xf32>
    %18 = arith.addf %16, %17 : vector<24x128xf32>
    %c1_16 = arith.constant 1 : index
    %c0_17 = arith.constant 0 : index
    %19 = vector.load %arg5[%c1_16, %c0_17] : memref<3x128xf32, #tpu.memory_space<vmem>>, vector<1x128xf32>
    %20 = vector.broadcast %19 : vector<1x128xf32> to vector<24x128xf32>
    %21 = arith.addf %18, %20 : vector<24x128xf32>
    %22 = vector.extract_strided_slice %7 {offsets = [0, 256], sizes = [24, 128], strides = [1, 1]} : vector<24x384xf32> to vector<24x128xf32>
    %23 = vector.extract_strided_slice %9 {offsets = [0, 128], sizes = [24, 128], strides = [1, 1]} : vector<24x256xf32> to vector<24x128xf32>
    %24 = arith.addf %22, %23 : vector<24x128xf32>
    %25 = arith.addf %24, %11 : vector<24x128xf32>
    %c2_18 = arith.constant 2 : index
    %c0_19 = arith.constant 0 : index
    %26 = vector.load %arg5[%c2_18, %c0_19] : memref<3x128xf32, #tpu.memory_space<vmem>>, vector<1x128xf32>
    %27 = vector.broadcast %26 : vector<1x128xf32> to vector<24x128xf32>
    %28 = arith.addf %25, %27 : vector<24x128xf32>
    %29 = vector.extract_strided_slice %15 {offsets = [0, 0], sizes = [8, 128], strides = [1, 1]} : vector<24x128xf32> to vector<8x128xf32>
    %30 = vector.extract_strided_slice %21 {offsets = [0, 0], sizes = [8, 128], strides = [1, 1]} : vector<24x128xf32> to vector<8x128xf32>
    %31 = vector.extract_strided_slice %28 {offsets = [0, 0], sizes = [8, 128], strides = [1, 1]} : vector<24x128xf32> to vector<8x128xf32>
    %32 = tpu.concatenate %29, %30, %31 in 0 : vector<8x128xf32>, vector<8x128xf32>, vector<8x128xf32> -> vector<24x128xf32>
    %33 = vector.extract_strided_slice %15 {offsets = [8, 0], sizes = [16, 128], strides = [1, 1]} : vector<24x128xf32> to vector<16x128xf32>
    %34 = vector.extract_strided_slice %21 {offsets = [8, 0], sizes = [16, 128], strides = [1, 1]} : vector<24x128xf32> to vector<16x128xf32>
    %35 = vector.extract_strided_slice %28 {offsets = [8, 0], sizes = [16, 128], strides = [1, 1]} : vector<24x128xf32> to vector<16x128xf32>
    %36 = tpu.concatenate %33, %34, %35 in 0 : vector<16x128xf32>, vector<16x128xf32>, vector<16x128xf32> -> vector<48x128xf32>
    %cst_20 = arith.constant 0.000000e+00 : f32
    %37 = vector.broadcast %cst_20 : f32 to vector<24x128xf32>
    %38 = arith.maximumf %32, %37 : vector<24x128xf32>
    %cst_21 = arith.constant 9.99999971E-10 : f32
    %39 = vector.broadcast %cst_21 : f32 to vector<24x128xf32>
    %40 = arith.addf %38, %39 : vector<24x128xf32>
    %41 = arith.mulf %40, %40 : vector<24x128xf32>
    %cst_22 = arith.constant dense<0.000000e+00> : vector<24xf32>
    %42 = vector.multi_reduction <add>, %41, %cst_22 [1] : vector<24x128xf32> to vector<24xf32>
    %43 = vector.shape_cast %42 : vector<24xf32> to vector<24x1xf32>
    %cst_23 = arith.constant 9.99999968E-21 : f32
    %44 = vector.broadcast %cst_23 : f32 to vector<24x1xf32>
    %45 = arith.maximumf %43, %44 : vector<24x1xf32>
    %46 = math.rsqrt %45 : vector<24x1xf32>
    %47 = vector.broadcast %46 : vector<24x1xf32> to vector<24x128xf32>
    %48 = arith.mulf %40, %47 : vector<24x128xf32>
    %cst_24 = arith.constant 0.000000e+00 : f32
    %49 = vector.broadcast %cst_24 : f32 to vector<48x128xf32>
    %50 = arith.maximumf %36, %49 : vector<48x128xf32>
    %cst_25 = arith.constant 9.99999971E-10 : f32
    %51 = vector.broadcast %cst_25 : f32 to vector<48x128xf32>
    %52 = arith.addf %50, %51 : vector<48x128xf32>
    %53 = arith.mulf %52, %52 : vector<48x128xf32>
    %cst_26 = arith.constant dense<0.000000e+00> : vector<48xf32>
    %54 = vector.multi_reduction <add>, %53, %cst_26 [1] : vector<48x128xf32> to vector<48xf32>
    %55 = vector.shape_cast %54 : vector<48xf32> to vector<48x1xf32>
    %cst_27 = arith.constant 9.99999968E-21 : f32
    %56 = vector.broadcast %cst_27 : f32 to vector<48x1xf32>
    %57 = arith.maximumf %55, %56 : vector<48x1xf32>
    %58 = math.rsqrt %57 : vector<48x1xf32>
    %59 = vector.broadcast %58 : vector<48x1xf32> to vector<48x128xf32>
    %60 = arith.mulf %52, %59 : vector<48x128xf32>
    %cst_28 = arith.constant dense<0.000000e+00> : vector<24x48xf32>
    %61 = tpu.matmul %48, %60, %cst_28 {dimension_numbers = #tpu.dot_dimension_numbers<[1], [1], [0], [0], [0, 0, 1, 0], [], []>} : vector<24x128xf32>, vector<48x128xf32>, vector<24x48xf32> -> vector<24x48xf32>
    %c0_29 = arith.constant 0 : index
    %c0_30 = arith.constant 0 : index
    %c0_31 = arith.constant 0 : index
    %62 = vector.load %arg7[%c0_29, %c0_30, %c0_31] : memref<1x48x3xf32, #tpu.memory_space<vmem>>, vector<1x48x3xf32>
    %63 = vector.shape_cast %62 : vector<1x48x3xf32> to vector<48x3xf32>
    %cst_32 = arith.constant 1.000000e+00 : f32
    %64 = vector.broadcast %cst_32 : f32 to vector<24x48xf32>
    %65 = arith.subf %61, %64 : vector<24x48xf32>
    %66 = arith.mulf %65, %65 : vector<24x48xf32>
    %cst_33 = arith.constant -5.000000e+05 : f32
    %67 = vector.broadcast %cst_33 : f32 to vector<24x48xf32>
    %68 = arith.mulf %66, %67 : vector<24x48xf32>
    %69 = math.exp %68 : vector<24x48xf32>
    %cst_34 = arith.constant 0.899999976 : f32
    %70 = vector.broadcast %cst_34 : f32 to vector<24x48xf32>
    %71 = arith.subf %61, %70 : vector<24x48xf32>
    %72 = arith.mulf %71, %71 : vector<24x48xf32>
    %cst_35 = arith.constant -5.000000e+01 : f32
    %73 = vector.broadcast %cst_35 : f32 to vector<24x48xf32>
    %74 = arith.mulf %72, %73 : vector<24x48xf32>
    %75 = math.exp %74 : vector<24x48xf32>
    %cst_36 = arith.constant -2.000000e+01 : f32
    %76 = vector.broadcast %cst_36 : f32 to vector<24x48xf32>
    %77 = arith.mulf %61, %76 : vector<24x48xf32>
    %78 = math.exp %77 : vector<24x48xf32>
    %cst_37 = arith.constant dense<0.000000e+00> : vector<24x3xf32>
    %79 = tpu.matmul %69, %63, %cst_37 {dimension_numbers = #tpu.dot_dimension_numbers<[1], [0], [0], [1], [0, 0, 1, 1], [], []>} : vector<24x48xf32>, vector<48x3xf32>, vector<24x3xf32> -> vector<24x3xf32>
    %cst_38 = arith.constant dense<0.000000e+00> : vector<24x3xf32>
    %80 = tpu.matmul %75, %63, %cst_38 {dimension_numbers = #tpu.dot_dimension_numbers<[1], [0], [0], [1], [0, 0, 1, 1], [], []>} : vector<24x48xf32>, vector<48x3xf32>, vector<24x3xf32> -> vector<24x3xf32>
    %81 = arith.mulf %75, %78 : vector<24x48xf32>
    %cst_39 = arith.constant dense<0.000000e+00> : vector<24x3xf32>
    %82 = tpu.matmul %81, %63, %cst_39 {dimension_numbers = #tpu.dot_dimension_numbers<[1], [0], [0], [1], [0, 0, 1, 1], [], []>} : vector<24x48xf32>, vector<48x3xf32>, vector<24x3xf32> -> vector<24x3xf32>
    %cst_40 = arith.constant 0x4B07975F : f32
    %83 = vector.broadcast %cst_40 : f32 to vector<24x3xf32>
    %84 = arith.mulf %82, %83 : vector<24x3xf32>
    %85 = arith.mulf %81, %78 : vector<24x48xf32>
    %cst_41 = arith.constant dense<0.000000e+00> : vector<24x3xf32>
    %86 = tpu.matmul %85, %63, %cst_41 {dimension_numbers = #tpu.dot_dimension_numbers<[1], [0], [0], [1], [0, 0, 1, 1], [], []>} : vector<24x48xf32>, vector<48x3xf32>, vector<24x3xf32> -> vector<24x3xf32>
    %cst_42 = arith.constant 1.4462571E+12 : f32
    %87 = vector.broadcast %cst_42 : f32 to vector<24x3xf32>
    %88 = arith.mulf %86, %87 : vector<24x3xf32>
    %89 = arith.mulf %85, %78 : vector<24x48xf32>
    %cst_43 = arith.constant dense<0.000000e+00> : vector<24x3xf32>
    %90 = tpu.matmul %89, %63, %cst_43 {dimension_numbers = #tpu.dot_dimension_numbers<[1], [0], [0], [1], [0, 0, 1, 1], [], []>} : vector<24x48xf32>, vector<48x3xf32>, vector<24x3xf32> -> vector<24x3xf32>
    %cst_44 = arith.constant 4.31123153E+15 : f32
    %91 = vector.broadcast %cst_44 : f32 to vector<24x3xf32>
    %92 = arith.mulf %90, %91 : vector<24x3xf32>
    %93 = arith.mulf %89, %78 : vector<24x48xf32>
    %cst_45 = arith.constant dense<0.000000e+00> : vector<24x3xf32>
    %94 = tpu.matmul %93, %63, %cst_45 {dimension_numbers = #tpu.dot_dimension_numbers<[1], [0], [0], [1], [0, 0, 1, 1], [], []>} : vector<24x48xf32>, vector<48x3xf32>, vector<24x3xf32> -> vector<24x3xf32>
    %cst_46 = arith.constant 2.3538527E+17 : f32
    %95 = vector.broadcast %cst_46 : f32 to vector<24x3xf32>
    %96 = arith.mulf %94, %95 : vector<24x3xf32>
    %97 = arith.mulf %93, %78 : vector<24x48xf32>
    %cst_47 = arith.constant dense<0.000000e+00> : vector<24x3xf32>
    %98 = tpu.matmul %97, %63, %cst_47 {dimension_numbers = #tpu.dot_dimension_numbers<[1], [0], [0], [1], [0, 0, 1, 1], [], []>} : vector<24x48xf32>, vector<48x3xf32>, vector<24x3xf32> -> vector<24x3xf32>
    %cst_48 = arith.constant 2.3538527E+17 : f32
    %99 = vector.broadcast %cst_48 : f32 to vector<24x3xf32>
    %100 = arith.mulf %98, %99 : vector<24x3xf32>
    %101 = arith.mulf %97, %78 : vector<24x48xf32>
    %cst_49 = arith.constant dense<0.000000e+00> : vector<24x3xf32>
    %102 = tpu.matmul %101, %63, %cst_49 {dimension_numbers = #tpu.dot_dimension_numbers<[1], [0], [0], [1], [0, 0, 1, 1], [], []>} : vector<24x48xf32>, vector<48x3xf32>, vector<24x3xf32> -> vector<24x3xf32>
    %cst_50 = arith.constant 4.31123153E+15 : f32
    %103 = vector.broadcast %cst_50 : f32 to vector<24x3xf32>
    %104 = arith.mulf %102, %103 : vector<24x3xf32>
    %105 = arith.mulf %101, %78 : vector<24x48xf32>
    %cst_51 = arith.constant dense<0.000000e+00> : vector<24x3xf32>
    %106 = tpu.matmul %105, %63, %cst_51 {dimension_numbers = #tpu.dot_dimension_numbers<[1], [0], [0], [1], [0, 0, 1, 1], [], []>} : vector<24x48xf32>, vector<48x3xf32>, vector<24x3xf32> -> vector<24x3xf32>
    %cst_52 = arith.constant 1.4462571E+12 : f32
    %107 = vector.broadcast %cst_52 : f32 to vector<24x3xf32>
    %108 = arith.mulf %106, %107 : vector<24x3xf32>
    %109 = arith.mulf %105, %78 : vector<24x48xf32>
    %cst_53 = arith.constant dense<0.000000e+00> : vector<24x3xf32>
    %110 = tpu.matmul %109, %63, %cst_53 {dimension_numbers = #tpu.dot_dimension_numbers<[1], [0], [0], [1], [0, 0, 1, 1], [], []>} : vector<24x48xf32>, vector<48x3xf32>, vector<24x3xf32> -> vector<24x3xf32>
    %cst_54 = arith.constant 0x4B07975F : f32
    %111 = vector.broadcast %cst_54 : f32 to vector<24x3xf32>
    %112 = arith.mulf %110, %111 : vector<24x3xf32>
    %113 = arith.mulf %109, %78 : vector<24x48xf32>
    %cst_55 = arith.constant dense<0.000000e+00> : vector<24x3xf32>
    %114 = tpu.matmul %113, %63, %cst_55 {dimension_numbers = #tpu.dot_dimension_numbers<[1], [0], [0], [1], [0, 0, 1, 1], [], []>} : vector<24x48xf32>, vector<48x3xf32>, vector<24x3xf32> -> vector<24x3xf32>
    %cst_56 = arith.constant 1.000000e+00 : f32
    %115 = vector.broadcast %cst_56 : f32 to vector<24x3xf32>
    %116 = arith.mulf %114, %115 : vector<24x3xf32>
    %117 = tpu.concatenate %79, %80, %84, %88, %92, %96, %100, %104, %108, %112, %116 in 1 : vector<24x3xf32>, vector<24x3xf32>, vector<24x3xf32>, vector<24x3xf32>, vector<24x3xf32>, vector<24x3xf32>, vector<24x3xf32>, vector<24x3xf32>, vector<24x3xf32>, vector<24x3xf32>, vector<24x3xf32> -> vector<24x33xf32>
    %cst_57 = arith.constant 1.000000e-10 : f32
    %118 = vector.broadcast %cst_57 : f32 to vector<24x33xf32>
    %119 = arith.maximumf %117, %118 : vector<24x33xf32>
    %120 = math.log %119 : vector<24x33xf32>
    %c0_58 = arith.constant 0 : index
    %c0_59 = arith.constant 0 : index
    %c0_60 = arith.constant 0 : index
    %121 = vector.load %arg6[%c0_58, %c0_59, %c0_60] : memref<1x3x24xf32, #tpu.memory_space<vmem>>, vector<1x3x24xf32>
    %122 = vector.shape_cast %121 : vector<1x3x24xf32> to vector<3x24xf32>
    %cst_61 = arith.constant dense<0.000000e+00> : vector<3x33xf32>
    %123 = tpu.matmul %122, %120, %cst_61 {dimension_numbers = #tpu.dot_dimension_numbers<[1], [0], [0], [1], [0, 0, 1, 1], [], []>} : vector<3x24xf32>, vector<24x33xf32>, vector<3x33xf32> -> vector<3x33xf32>
    %c0_62 = arith.constant 0 : index
    %c0_63 = arith.constant 0 : index
    %c0_64 = arith.constant 0 : index
    %124 = vector.load %arg8[%c0_62, %c0_63, %c0_64] : memref<1x3x33xf32, #tpu.memory_space<vmem>>, vector<1x3x33xf32>
    %125 = vector.shape_cast %124 : vector<1x3x33xf32> to vector<3x33xf32>
    %126 = vector.shape_cast %123 : vector<3x33xf32> to vector<1x3x33xf32>
    tpu.vector_store %arg8[%c0_62, %c0_63, %c0_64], %126 {strides = array<i32>} : memref<1x3x33xf32, #tpu.memory_space<vmem>>, vector<1x3x33xf32>,
    return
  }
  func.func @transform_0(%arg0: i32) -> (i32, i32, i32) {
    %c0_i32 = arith.constant 0 : i32
    %c0_i32_0 = arith.constant 0 : i32
    %c0_i32_1 = arith.constant 0 : i32
    return %arg0, %c0_i32, %c0_i32_0 : i32, i32, i32
  }
  func.func @transform_1(%arg0: i32) -> (i32, i32) {
    %c0_i32 = arith.constant 0 : i32
    %c0_i32_0 = arith.constant 0 : i32
    %c0_i32_1 = arith.constant 0 : i32
    return %c0_i32, %c0_i32_0 : i32, i32
  }
  func.func @transform_2(%arg0: i32) -> (i32, i32) {
    %c0_i32 = arith.constant 0 : i32
    %c0_i32_0 = arith.constant 0 : i32
    %c0_i32_1 = arith.constant 0 : i32
    return %c0_i32, %c0_i32_0 : i32, i32
  }
  func.func @transform_3(%arg0: i32) -> (i32, i32) {
    %c0_i32 = arith.constant 0 : i32
    %c0_i32_0 = arith.constant 0 : i32
    %c0_i32_1 = arith.constant 0 : i32
    return %c0_i32, %c0_i32_0 : i32, i32
  }
  func.func @transform_4(%arg0: i32) -> (i32, i32) {
    %c0_i32 = arith.constant 0 : i32
    %c0_i32_0 = arith.constant 0 : i32
    %c0_i32_1 = arith.constant 0 : i32
    return %c0_i32, %c0_i32_0 : i32, i32
  }
  func.func @transform_5(%arg0: i32) -> (i32, i32, i32) {
    %c0_i32 = arith.constant 0 : i32
    %c0_i32_0 = arith.constant 0 : i32
    %c0_i32_1 = arith.constant 0 : i32
    return %arg0, %c0_i32, %c0_i32_0 : i32, i32, i32
  }
  func.func @transform_6(%arg0: i32) -> (i32, i32, i32) {
    %c0_i32 = arith.constant 0 : i32
    %c0_i32_0 = arith.constant 0 : i32
    %c0_i32_1 = arith.constant 0 : i32
    return %arg0, %c0_i32, %c0_i32_0 : i32, i32, i32
  }
  func.func @transform_7(%arg0: i32) -> (i32, i32, i32) {
    %c0_i32 = arith.constant 0 : i32
    %c0_i32_0 = arith.constant 0 : i32
    %c0_i32_1 = arith.constant 0 : i32
    return %arg0, %c0_i32, %c0_i32_0 : i32, i32, i32
  }
}

</mosaic_0001>

<llo_original>
// kernel: squeeze.8
$region0: #{squeeze.8}
  %s0 = inlined_call_operand.vmem [shape: f32[16], index: 0, kind: input, shape index: {}]
  %s1 = inlined_call_operand.vmem [shape: f32[2,8], index: 1, kind: output, shape index: {}]
  $region1: #{squeeze.8} parent=0
    #allocation0 [shape = 'u8[4096]{0}', space=vmem, size = 0x1000, scoped, tag = 'scoped mem for output reshape']
    #allocation1 [shape = 'u8[4096]{0}', space=vmem, size = 0x1000, scoped, tag = 'scoped mem for input reshape']
    %s3 = sshll.u32 1, 1
    %s4 = ssub.s32 %s3, 1
    %v5 = vld [vmem:[%s0] sm:%s4]
    %6 = vst [vmem:[#allocation1] sm:%s4] %v5
    %v7 = vld [vmem:[#allocation1] sm:$0x1]
    %vm8 = vcmask 64512
    %9 = vst.msk [vmem:[#allocation0] sm:$0x1] %vm8, %v7
    %v10 = vld [vmem:[#allocation1] sm:$0x1]
    %11 = vrot.lane.b32.xlu0 %v10, 120
    %v12 = vpop.permute.xlu0 %11
    %vm13 = vcmask 64512
    %s14 = scalar_lea.vmem [#allocation0], 1
    %15 = vst.msk [vmem:[%s14] sm:$0x1] %vm13, %v12
    %s17 = sshll.u32 1, 2
    %s18 = ssub.s32 %s17, 1
    %v20 = vld [vmem:[#allocation0] sm:%s18]
    %s21 = sshll.u32 1, 2
    %s22 = ssub.s32 %s21, 1
    %23 = vst [vmem:[%s1] sm:%s22] %v20

// kernel: cknrm_forward.1
$region0: #{cknrm_forward.1}
  #allocation0 [shape = 'u32[]', space=smem, size = 0x4, offset = 0x4, fixed_abs, tag = 'smem constant byte address 0x4 - core index']
  #allocation1 [shape = 'u32[144,128]{1,0:T(1,128)}', space=vmem, size = 0x12000, scoped, tag = 'internal scratch']
  %s0 = inlined_call_operand.vmem [shape: f32[2,32,32], index: 0, kind: input, shape index: {}]
  %s1 = inlined_call_operand.vmem [shape: f32[32,384], index: 1, kind: input, shape index: {}]
  %s2 = inlined_call_operand.vmem [shape: f32[32,256], index: 2, kind: input, shape index: {}]
  %s3 = inlined_call_operand.vmem [shape: f32[32,128], index: 3, kind: input, shape index: {}]
  %s4 = inlined_call_operand.vmem [shape: f32[3,128], index: 4, kind: input, shape index: {}]
  %s5 = inlined_call_operand.vmem [shape: f32[2,3,24], index: 5, kind: input, shape index: {}]
  %s6 = inlined_call_operand.vmem [shape: f32[2,48,3], index: 6, kind: input, shape index: {}]
  %s7 = inlined_call_operand.vmem [shape: f32[2,3,33], index: 7, kind: output, shape index: {}]
  %s8 = sld [smem:[#allocation0]]
  $region61: #{cknrm_forward.1} parent=0
    _
  %s10 = ssub.s32 1, %s8
  %s11 = scalar_select 0, %s10, %s8
  loop: start=0, step=1, limit=4
  $region2: #{cknrm_forward.1} parent=0 // loop_pre_header
    _
  $region3: #{cknrm_forward.1} parent=0 // loop_header
    %s13 = sphi 0, %s17
    %p14 = scmp.ge.s32.totalorder %s13, 4
    %s23 = sphi 0, %s25
    %s26 = sphi 0, %s23
    %s27 = sphi 0, %s26
    %s43 = sphi 0, %s27
    %s47 = sphi 0, %s47
    %s49 = sphi 0, %s47
    %s50 = sphi 0, %s49
    %s64 = sphi 0, %s50
    %s68 = sphi 0, %s68
    %s70 = sphi 0, %s68
    %s71 = sphi 0, %s70
    %s85 = sphi 0, %s71
    %s89 = sphi 0, %s89
    %s91 = sphi 0, %s89
    %s92 = sphi 0, %s91
    %s106 = sphi 0, %s92
    %s110 = sphi 0, %s110
    %s112 = sphi 0, %s110
    %s113 = sphi 0, %s112
    %s127 = sphi 0, %s113
    %s133 = sphi 0, %s135
    %s136 = sphi 0, %s133
    %s137 = sphi 0, %s136
    %s153 = sphi 0, %s137
    %s159 = sphi 0, %s161
    %s162 = sphi 0, %s159
    %s163 = sphi 0, %s162
    %s179 = sphi 0, %s163
    %s185 = sphi 0, %s187
    %s188 = sphi 0, %s185
    %s189 = sphi 0, %s188
    %s205 = sphi 0, %s189
  $region4: #{cknrm_forward.1} parent=0 // loop_header_branch
    %16 = sbr.rel (%p14) target = $region8
  $region5: #{cknrm_forward.1} parent=0 // loop_body
    %s18 = ssub.s32 %s13, 1
    %s19 = ssub.s32 %s13, 2
    %s20 = sadd.s32 %s13, 1
    %s21 = ssub.s32 %s13, %s20
    %p22 = scmp.eq.s32.totalorder %s21, 0
    %s24 = sadd.s32 %s23, 1
    %s25 = scalar_select %p22, %s23, %s24
    %p28 = pneg %p22
    %p29 = scmp.eq.s32.totalorder %s13, 1
    %p30 = por %p28, %p29
    %p31 = scmp.ne.s32.totalorder %s23, %s26
    %p32 = scmp.eq.s32.totalorder %s13, 0
    %p33 = por %p31, %p32
    %p34 = scmp.ne.s32.totalorder %s23, %s26
    %p35 = scmp.eq.s32.totalorder %s18, 1
    %p36 = por %p34, %p35
    %p37 = scmp.ne.s32.totalorder %s26, %s27
    %p38 = scmp.eq.s32.totalorder %s18, 0
    %p39 = por %p37, %p38
    %p40 = scmp.ne.s32.totalorder %s26, %s27
    %p41 = scmp.eq.s32.totalorder %s19, 1
    %p42 = por %p40, %p41
    %p44 = scmp.ne.s32.totalorder %s27, %s43
    %p45 = scmp.eq.s32.totalorder %s19, 0
    %p46 = por %p44, %p45
    %s48 = sadd.s32 %s47, 1
    %p51 = scmp.eq.s32.totalorder %s13, 1
    %p52 = scmp.ne.s32.totalorder %s47, %s49
    %p53 = scmp.eq.s32.totalorder %s13, 0
    %p54 = por %p52, %p53
    %p55 = scmp.ne.s32.totalorder %s47, %s49
    %p56 = scmp.eq.s32.totalorder %s18, 1
    %p57 = por %p55, %p56
    %p58 = scmp.ne.s32.totalorder %s49, %s50
    %p59 = scmp.eq.s32.totalorder %s18, 0
    %p60 = por %p58, %p59
    %p61 = scmp.ne.s32.totalorder %s49, %s50
    %p62 = scmp.eq.s32.totalorder %s19, 1
    %p63 = por %p61, %p62
    %p65 = scmp.ne.s32.totalorder %s50, %s64
    %p66 = scmp.eq.s32.totalorder %s19, 0
    %p67 = por %p65, %p66
    %s69 = sadd.s32 %s68, 1
    %p72 = scmp.eq.s32.totalorder %s13, 1
    %p73 = scmp.ne.s32.totalorder %s68, %s70
    %p74 = scmp.eq.s32.totalorder %s13, 0
    %p75 = por %p73, %p74
    %p76 = scmp.ne.s32.totalorder %s68, %s70
    %p77 = scmp.eq.s32.totalorder %s18, 1
    %p78 = por %p76, %p77
    %p79 = scmp.ne.s32.totalorder %s70, %s71
    %p80 = scmp.eq.s32.totalorder %s18, 0
    %p81 = por %p79, %p80
    %p82 = scmp.ne.s32.totalorder %s70, %s71
    %p83 = scmp.eq.s32.totalorder %s19, 1
    %p84 = por %p82, %p83
    %p86 = scmp.ne.s32.totalorder %s71, %s85
    %p87 = scmp.eq.s32.totalorder %s19, 0
    %p88 = por %p86, %p87
    %s90 = sadd.s32 %s89, 1
    %p93 = scmp.eq.s32.totalorder %s13, 1
    %p94 = scmp.ne.s32.totalorder %s89, %s91
    %p95 = scmp.eq.s32.totalorder %s13, 0
    %p96 = por %p94, %p95
    %p97 = scmp.ne.s32.totalorder %s89, %s91
    %p98 = scmp.eq.s32.totalorder %s18, 1
    %p99 = por %p97, %p98
    %p100 = scmp.ne.s32.totalorder %s91, %s92
    %p101 = scmp.eq.s32.totalorder %s18, 0
    %p102 = por %p100, %p101
    %p103 = scmp.ne.s32.totalorder %s91, %s92
    %p104 = scmp.eq.s32.totalorder %s19, 1
    %p105 = por %p103, %p104
    %p107 = scmp.ne.s32.totalorder %s92, %s106
    %p108 = scmp.eq.s32.totalorder %s19, 0
    %p109 = por %p107, %p108
    %s111 = sadd.s32 %s110, 1
    %p114 = scmp.eq.s32.totalorder %s13, 1
    %p115 = scmp.ne.s32.totalorder %s110, %s112
    %p116 = scmp.eq.s32.totalorder %s13, 0
    %p117 = por %p115, %p116
    %p118 = scmp.ne.s32.totalorder %s110, %s112
    %p119 = scmp.eq.s32.totalorder %s18, 1
    %p120 = por %p118, %p119
    %p121 = scmp.ne.s32.totalorder %s112, %s113
    %p122 = scmp.eq.s32.totalorder %s18, 0
    %p123 = por %p121, %p122
    %p124 = scmp.ne.s32.totalorder %s112, %s113
    %p125 = scmp.eq.s32.totalorder %s19, 1
    %p126 = por %p124, %p125
    %p128 = scmp.ne.s32.totalorder %s113, %s127
    %p129 = scmp.eq.s32.totalorder %s19, 0
    %p130 = por %p128, %p129
    %s131 = ssub.s32 %s13, %s20
    %p132 = scmp.eq.s32.totalorder %s131, 0
    %s134 = sadd.s32 %s133, 1
    %s135 = scalar_select %p132, %s133, %s134
    %p138 = pneg %p132
    %p139 = scmp.eq.s32.totalorder %s13, 1
    %p140 = por %p138, %p139
    %p141 = scmp.ne.s32.totalorder %s133, %s136
    %p142 = scmp.eq.s32.totalorder %s13, 0
    %p143 = por %p141, %p142
    %p144 = scmp.ne.s32.totalorder %s133, %s136
    %p145 = scmp.eq.s32.totalorder %s18, 1
    %p146 = por %p144, %p145
    %p147 = scmp.ne.s32.totalorder %s136, %s137
    %p148 = scmp.eq.s32.totalorder %s18, 0
    %p149 = por %p147, %p148
    %p150 = scmp.ne.s32.totalorder %s136, %s137
    %p151 = scmp.eq.s32.totalorder %s19, 1
    %p152 = por %p150, %p151
    %p154 = scmp.ne.s32.totalorder %s137, %s153
    %p155 = scmp.eq.s32.totalorder %s19, 0
    %p156 = por %p154, %p155
    %s157 = ssub.s32 %s13, %s20
    %p158 = scmp.eq.s32.totalorder %s157, 0
    %s160 = sadd.s32 %s159, 1
    %s161 = scalar_select %p158, %s159, %s160
    %p164 = pneg %p158
    %p165 = scmp.eq.s32.totalorder %s13, 1
    %p166 = por %p164, %p165
    %p167 = scmp.ne.s32.totalorder %s159, %s162
    %p168 = scmp.eq.s32.totalorder %s13, 0
    %p169 = por %p167, %p168
    %p170 = scmp.ne.s32.totalorder %s159, %s162
    %p171 = scmp.eq.s32.totalorder %s18, 1
    %p172 = por %p170, %p171
    %p173 = scmp.ne.s32.totalorder %s162, %s163
    %p174 = scmp.eq.s32.totalorder %s18, 0
    %p175 = por %p173, %p174
    %p176 = scmp.ne.s32.totalorder %s162, %s163
    %p177 = scmp.eq.s32.totalorder %s19, 1
    %p178 = por %p176, %p177
    %p180 = scmp.ne.s32.totalorder %s163, %s179
    %p181 = scmp.eq.s32.totalorder %s19, 0
    %p182 = por %p180, %p181
    %s183 = ssub.s32 %s13, %s20
    %p184 = scmp.eq.s32.totalorder %s183, 0
    %s186 = sadd.s32 %s185, 1
    %s187 = scalar_select %p184, %s185, %s186
    %p190 = pneg %p184
    %p191 = scmp.eq.s32.totalorder %s13, 1
    %p192 = por %p190, %p191
    %p193 = scmp.ne.s32.totalorder %s185, %s188
    %p194 = scmp.eq.s32.totalorder %s13, 0
    %p195 = por %p193, %p194
    %p196 = scmp.ne.s32.totalorder %s185, %s188
    %p197 = scmp.eq.s32.totalorder %s18, 1
    %p198 = por %p196, %p197
    %p199 = scmp.ne.s32.totalorder %s188, %s189
    %p200 = scmp.eq.s32.totalorder %s18, 0
    %p201 = por %p199, %p200
    %p202 = scmp.ne.s32.totalorder %s188, %s189
    %p203 = scmp.eq.s32.totalorder %s19, 1
    %p204 = por %p202, %p203
    %p206 = scmp.ne.s32.totalorder %s189, %s205
    %p207 = scmp.eq.s32.totalorder %s19, 0
    %p208 = por %p206, %p207
    %p209 = scmp.le.s32.totalorder 1, %s13
    %p210 = scmp.lt.s32.totalorder %s13, 3
    %p211 = pnand %p209, %p210
    %p212 = pneg %p211
    // Predicated region
    $region9: #{cknrm_forward.1} parent=5 // pred_check
      _
    $region10: #{cknrm_forward.1} parent=5 // pred_check_branch
      %214 = sbr.rel (%p211) target = $region12
    $region11: #{cknrm_forward.1} parent=5 // pred_region
      %s215 = ssub.s32 %s13, 1
      // Predicated region
      $region13: #{cknrm_forward.1} parent=11 // pred_check
        %p216 = pneg %p60
      $region14: #{cknrm_forward.1} parent=11 // pred_check_branch
        %218 = sbr.rel (%p216) target = $region16
      $region15: #{cknrm_forward.1} parent=11 // pred_region
        _
      $region16: #{cknrm_forward.1} parent=11 // pred_fallthru
        _
      // Predicated region
      $region17: #{cknrm_forward.1} parent=11 // pred_check
        %p219 = pneg %p81
      $region18: #{cknrm_forward.1} parent=11 // pred_check_branch
        %221 = sbr.rel (%p219) target = $region20
      $region19: #{cknrm_forward.1} parent=11 // pred_region
        _
      $region20: #{cknrm_forward.1} parent=11 // pred_fallthru
        _
      // Predicated region
      $region21: #{cknrm_forward.1} parent=11 // pred_check
        %p222 = pneg %p102
      $region22: #{cknrm_forward.1} parent=11 // pred_check_branch
        %224 = sbr.rel (%p222) target = $region24
      $region23: #{cknrm_forward.1} parent=11 // pred_region
        _
      $region24: #{cknrm_forward.1} parent=11 // pred_fallthru
        _
      // Predicated region
      $region25: #{cknrm_forward.1} parent=11 // pred_check
        %p225 = pneg %p123
      $region26: #{cknrm_forward.1} parent=11 // pred_check_branch
        %227 = sbr.rel (%p225) target = $region28
      $region27: #{cknrm_forward.1} parent=11 // pred_region
        _
      $region28: #{cknrm_forward.1} parent=11 // pred_fallthru
        _
    $region12: #{cknrm_forward.1} parent=5 // pred_fallthru
      _
    %p228 = scmp.lt.s32.totalorder %s13, 2
    // Predicated region
    $region29: #{cknrm_forward.1} parent=5 // pred_check
      %p229 = pneg %p228
    $region30: #{cknrm_forward.1} parent=5 // pred_check_branch
      %231 = sbr.rel (%p229) target = $region32
    $region31: #{cknrm_forward.1} parent=5 // pred_region
      // Predicated region
      $region33: #{cknrm_forward.1} parent=31 // pred_check
        %p232 = pneg %p33
      $region34: #{cknrm_forward.1} parent=31 // pred_check_branch
        %234 = sbr.rel (%p232) target = $region36
      $region35: #{cknrm_forward.1} parent=31 // pred_region
        %p235 = scmp.lt.s32.totalorder %s13, 1
        %s236 = scalar_select %p235, %s13, 1
        %s237 = smul.addr %s236, 4
        %s238 = smul.addr %s237, 8
        %s239 = scalar_lea.vmem %s0, %s238
      $region36: #{cknrm_forward.1} parent=31 // pred_fallthru
        _
      // Predicated region
      $region37: #{cknrm_forward.1} parent=31 // pred_check
        %p240 = pneg %p143
      $region38: #{cknrm_forward.1} parent=31 // pred_check_branch
        %242 = sbr.rel (%p240) target = $region40
      $region39: #{cknrm_forward.1} parent=31 // pred_region
        %p243 = scmp.lt.s32.totalorder %s13, 1
        %s244 = scalar_select %p243, %s13, 1
        %s245 = smul.addr %s244, 4
        %s246 = scalar_lea.vmem %s5, %s245
      $region40: #{cknrm_forward.1} parent=31 // pred_fallthru
        _
      // Predicated region
      $region41: #{cknrm_forward.1} parent=31 // pred_check
        %p247 = pneg %p169
      $region42: #{cknrm_forward.1} parent=31 // pred_check_branch
        %249 = sbr.rel (%p247) target = $region44
      $region43: #{cknrm_forward.1} parent=31 // pred_region
        %p250 = scmp.lt.s32.totalorder %s13, 1
        %s251 = scalar_select %p250, %s13, 1
        %s252 = smul.addr %s251, 6
        %s253 = smul.addr %s252, 8
        %s254 = scalar_lea.vmem %s6, %s253
      $region44: #{cknrm_forward.1} parent=31 // pred_fallthru
        _
    $region32: #{cknrm_forward.1} parent=5 // pred_fallthru
      _
    %p255 = scmp.le.s32.totalorder 1, %s13
    %p256 = scmp.lt.s32.totalorder %s13, 3
    %p257 = pnand %p255, %p256
    %p258 = pneg %p257
    // Predicated region
    $region45: #{cknrm_forward.1} parent=5 // pred_check
      _
    $region46: #{cknrm_forward.1} parent=5 // pred_check_branch
      %260 = sbr.rel (%p257) target = $region48
    $region47: #{cknrm_forward.1} parent=5 // pred_region
      %s261 = ssub.s32 %s13, 1
      %p262 = scmp.lt.s32.totalorder %s18, 1
      %s263 = scalar_select %p262, %s18, 1
      %s264 = smul.addr %s263, 4
      %s265 = smul.addr %s264, 8
      %s266 = scalar_lea.vmem %s0, %s265
      %p267 = pneg %p39
      %p268 = pneg %p36
      %p269 = pneg %p60
      %p270 = pneg %p57
      %p271 = pneg %p81
      %p272 = pneg %p78
      %p273 = pneg %p102
      %p274 = pneg %p99
      %p275 = pneg %p123
      %p276 = pneg %p120
      %p277 = scmp.lt.s32.totalorder %s18, 1
      %s278 = scalar_select %p277, %s18, 1
      %s279 = smul.addr %s278, 4
      %s280 = scalar_lea.vmem %s5, %s279
      %p281 = pneg %p149
      %p282 = pneg %p146
      %p283 = scmp.lt.s32.totalorder %s18, 1
      %s284 = scalar_select %p283, %s18, 1
      %s285 = smul.addr %s284, 6
      %s286 = smul.addr %s285, 8
      %s287 = scalar_lea.vmem %s6, %s286
      %p288 = pneg %p175
      %p289 = pneg %p172
      %p290 = pneg %p201
      %p291 = pneg %p198
      %p292 = scmp.lt.s32.totalorder %s18, 1
      %s293 = scalar_select %p292, %s18, 1
      %s294 = smul.addr %s293, 4
      %s295 = scalar_lea.vmem %s7, %s294
      %p296 = scmp.lt.s32.totalorder %s18, 1
      %s297 = scalar_select %p296, %s18, 1
      %s298 = smul.addr %s297, 4
      %s299 = smul.addr %s298, 8
      %s300 = scalar_lea.vmem %s0, %s299
      %p301 = scmp.lt.s32.totalorder %s18, 1
      %s302 = scalar_select %p301, %s18, 1
      %s303 = smul.addr %s302, 4
      %s304 = scalar_lea.vmem %s5, %s303
      %p305 = scmp.lt.s32.totalorder %s18, 1
      %s306 = scalar_select %p305, %s18, 1
      %s307 = smul.addr %s306, 6
      %s308 = smul.addr %s307, 8
      %s309 = scalar_lea.vmem %s6, %s308
      %p310 = scmp.lt.s32.totalorder %s18, 1
      %s311 = scalar_select %p310, %s18, 1
      %s312 = smul.addr %s311, 4
      %s313 = scalar_lea.vmem %s7, %s312
      %v314 = vld [vmem:[%s300] sm:$0xff]
      %v315 = vld [vmem:[%s300 + $0x8] sm:$0xff]
      %v316 = vld [vmem:[%s300 + $0x10] sm:$0xff]
      %v317 = vld [vmem:[%s300 + $0x1] sm:$0xff]
      %v318 = vld [vmem:[%s300 + $0x9] sm:$0xff]
      %v319 = vld [vmem:[%s300 + $0x11] sm:$0xff]
      %v320 = vld [vmem:[%s300 + $0x2] sm:$0xff]
      %v321 = vld [vmem:[%s300 + $0xa] sm:$0xff]
      %v322 = vld [vmem:[%s300 + $0x12] sm:$0xff]
      %v323 = vld [vmem:[%s1] sm:$0xff]
      %v324 = vld [vmem:[%s1 + $0x8] sm:$0xff]
      %v325 = vld [vmem:[%s1 + $0x10] sm:$0xff]
      %v326 = vld [vmem:[%s1 + $0x18] sm:$0xff]
      %v327 = vld [vmem:[%s1 + $0x20] sm:$0xff]
      %v328 = vld [vmem:[%s1 + $0x28] sm:$0xff]
      %v329 = vld [vmem:[%s1 + $0x30] sm:$0xff]
      %v330 = vld [vmem:[%s1 + $0x38] sm:$0xff]
      %v331 = vld [vmem:[%s1 + $0x40] sm:$0xff]
      %v332 = vld [vmem:[%s1 + $0x48] sm:$0xff]
      %v333 = vld [vmem:[%s1 + $0x50] sm:$0xff]
      %v334 = vld [vmem:[%s1 + $0x58] sm:$0xff]
      %vm335 = vcmask 261120
      %v337 = vsel %vm335, %v314, 0
      %v340 = vsel %vm335, %v315, 0
      %v343 = vsel %vm335, %v316, 0
      %345 = vmatprep.subr.mxu0 0.0
      %346 = vmatpush1.msra.mxu0 0.0
      %347 = vmatprep.subr.mxu0 0.0
      %348 = vmatpush1.msra.mxu0 0.0
      %349 = vmatprep.subr.mxu0 0.0
      %350 = vmatpush1.msra.mxu0 0.0
      %351 = vmatprep.subr.mxu0 0.0
      %352 = vmatpush1.msra.mxu0 0.0
      %353 = vmatprep.subr.mxu0 0.0
      %354 = vmatpush1.msra.mxu0 0.0
      %355 = vmatprep.subr.mxu0 0.0
      %356 = vmatpush1.msra.mxu0 0.0
      %357 = vmatprep.subr.mxu0 0.0
      %358 = vmatpush1.msra.mxu0 0.0
      %359 = vmatprep.subr.mxu0 0.0
      %360 = vmatpush1.msra.mxu0 0.0
      %361 = vmatprep.subr.mxu0 0.0
      %362 = vmatpush1.msra.mxu0 0.0
      %363 = vmatprep.subr.mxu0 0.0
      %364 = vmatpush1.msra.mxu0 0.0
      %365 = vmatprep.subr.mxu0 0.0
      %366 = vmatpush1.msra.mxu0 0.0
      %367 = vmatprep.subr.mxu0 0.0
      %368 = vmatpush1.msra.mxu0 0.0
      %369 = vmatprep.subr.mxu0 %v333
      %370 = vmatpush1.msra.mxu0 %v332
      %371 = vmatprep.subr.mxu0 %v330
      %372 = vmatpush1.msra.mxu0 %v329
      %373 = vmatprep.subr.mxu0 %v327
      %374 = vmatpush1.msra.mxu0 %v326
      %375 = vmatprep.subr.mxu0 %v324
      %376 = vmatpush1.msra.mxu0 %v323
      %377 = vmatprep.subr.mxu0 0.0
      %378 = vmatpush2.msra.mxu0 0.0
      %379 = vmatprep.subr.mxu0 0.0
      %380 = vmatpush2.msra.mxu0 0.0
      %381 = vmatprep.subr.mxu0 0.0
      %382 = vmatpush2.msra.mxu0 0.0
      %383 = vmatprep.subr.mxu0 0.0
      %384 = vmatpush2.msra.mxu0 0.0
      %385 = vmatprep.subr.mxu0 0.0
      %386 = vmatpush2.msra.mxu0 0.0
      %387 = vmatprep.subr.mxu0 0.0
      %388 = vmatpush2.msra.mxu0 0.0
      %389 = vmatprep.subr.mxu0 0.0
      %390 = vmatpush2.msra.mxu0 0.0
      %391 = vmatprep.subr.mxu0 0.0
      %392 = vmatpush2.msra.mxu0 0.0
      %393 = vmatprep.subr.mxu0 0.0
      %394 = vmatpush2.msra.mxu0 0.0
      %395 = vmatprep.subr.mxu0 0.0
      %396 = vmatpush2.msra.mxu0 0.0
      %397 = vmatprep.subr.mxu0 0.0
      %398 = vmatpush2.msra.mxu0 0.0
      %399 = vmatprep.subr.mxu0 0.0
      %400 = vmatpush2.msra.mxu0 0.0
      %401 = vmatprep.subr.mxu0 0.0
      %402 = vmatpush2.msra.mxu0 0.0
      %403 = vmatprep.subr.mxu0 0.0
      %404 = vmatpush2.msra.mxu0 0.0
      %405 = vmatprep.subr.mxu0 0.0
      %406 = vmatpush2.msra.mxu0 0.0
      %407 = vmatprep.subr.mxu0 0.0
      %408 = vmatpush2.msra.mxu0 0.0
      %409 = vmatprep.mubr.f32.mxu0 0.0
      %410 = vmatmul.mubr.f32.gmra.mxu0 %v337
      %v411 = vpop.f32.mrf.mxu0
      %v412 = vadd.f32 0.0, %v411
      %v413 = vpop.f32.mrf.mxu0
      %v414 = vadd.f32 0.0, %v413
      %415 = vmatprep.mubr.f32.mxu0 0.0
      %416 = vmatmul.mubr.f32.gmra.mxu0 %v340
      %v417 = vpop.f32.mrf.mxu0
      %v418 = vadd.f32 0.0, %v417
      %v419 = vpop.f32.mrf.mxu0
      %v420 = vadd.f32 0.0, %v419
      %421 = vmatprep.mubr.f32.mxu0 0.0
      %422 = vmatmul.mubr.f32.gmra.mxu0 %v343
      %v423 = vpop.f32.mrf.mxu0
      %v424 = vadd.f32 0.0, %v423
      %v425 = vpop.f32.mrf.mxu0
      %v426 = vadd.f32 0.0, %v425
      %427 = vdwg.mxu0
      %428 = vmatprep.subr.mxu0 0.0
      %429 = vmatpush1.msra.mxu0 0.0
      %430 = vmatprep.subr.mxu0 0.0
      %431 = vmatpush1.msra.mxu0 0.0
      %432 = vmatprep.subr.mxu0 0.0
      %433 = vmatpush1.msra.mxu0 0.0
      %434 = vmatprep.subr.mxu0 0.0
      %435 = vmatpush1.msra.mxu0 0.0
      %436 = vmatprep.subr.mxu0 0.0
      %437 = vmatpush1.msra.mxu0 0.0
      %438 = vmatprep.subr.mxu0 0.0
      %439 = vmatpush1.msra.mxu0 0.0
      %440 = vmatprep.subr.mxu0 0.0
      %441 = vmatpush1.msra.mxu0 0.0
      %442 = vmatprep.subr.mxu0 0.0
      %443 = vmatpush1.msra.mxu0 0.0
      %444 = vmatprep.subr.mxu0 0.0
      %445 = vmatpush1.msra.mxu0 0.0
      %446 = vmatprep.subr.mxu0 0.0
      %447 = vmatpush1.msra.mxu0 0.0
      %448 = vmatprep.subr.mxu0 0.0
      %449 = vmatpush1.msra.mxu0 0.0
      %450 = vmatprep.subr.mxu0 0.0
      %451 = vmatpush1.msra.mxu0 0.0
      %452 = vmatprep.subr.mxu0 0.0
      %453 = vmatpush1.msra.mxu0 %v334
      %454 = vmatprep.subr.mxu0 0.0
      %455 = vmatpush1.msra.mxu0 %v331
      %456 = vmatprep.subr.mxu0 0.0
      %457 = vmatpush1.msra.mxu0 %v328
      %458 = vmatprep.subr.mxu0 0.0
      %459 = vmatpush1.msra.mxu0 %v325
      %460 = vmatprep.subr.mxu0 0.0
      %461 = vmatpush2.msra.mxu0 0.0
      %462 = vmatprep.subr.mxu0 0.0
      %463 = vmatpush2.msra.mxu0 0.0
      %464 = vmatprep.subr.mxu0 0.0
      %465 = vmatpush2.msra.mxu0 0.0
      %466 = vmatprep.subr.mxu0 0.0
      %467 = vmatpush2.msra.mxu0 0.0
      %468 = vmatprep.subr.mxu0 0.0
      %469 = vmatpush2.msra.mxu0 0.0
      %470 = vmatprep.subr.mxu0 0.0
      %471 = vmatpush2.msra.mxu0 0.0
      %472 = vmatprep.subr.mxu0 0.0
      %473 = vmatpush2.msra.mxu0 0.0
      %474 = vmatprep.subr.mxu0 0.0
      %475 = vmatpush2.msra.mxu0 0.0
      %476 = vmatprep.subr.mxu0 0.0
      %477 = vmatpush2.msra.mxu0 0.0
      %478 = vmatprep.subr.mxu0 0.0
      %479 = vmatpush2.msra.mxu0 0.0
      %480 = vmatprep.subr.mxu0 0.0
      %481 = vmatpush2.msra.mxu0 0.0
      %482 = vmatprep.subr.mxu0 0.0
      %483 = vmatpush2.msra.mxu0 0.0
      %484 = vmatprep.subr.mxu0 0.0
      %485 = vmatpush2.msra.mxu0 0.0
      %486 = vmatprep.subr.mxu0 0.0
      %487 = vmatpush2.msra.mxu0 0.0
      %488 = vmatprep.subr.mxu0 0.0
      %489 = vmatpush2.msra.mxu0 0.0
      %490 = vmatprep.subr.mxu0 0.0
      %491 = vmatpush2.msra.mxu0 0.0
      %492 = vmatprep.mubr.f32.mxu0 0.0
      %493 = vmatmul.mubr.f32.gmra.mxu0 %v337
      %v494 = vpop.f32.mrf.mxu0
      %v495 = vadd.f32 0.0, %v494
      %v496 = vpop.f32.mrf.mxu0
      %497 = vmatprep.mubr.f32.mxu0 0.0
      %498 = vmatmul.mubr.f32.gmra.mxu0 %v340
      %v499 = vpop.f32.mrf.mxu0
      %v500 = vadd.f32 0.0, %v499
      %v501 = vpop.f32.mrf.mxu0
      %502 = vmatprep.mubr.f32.mxu0 0.0
      %503 = vmatmul.mubr.f32.gmra.mxu0 %v343
      %v504 = vpop.f32.mrf.mxu0
      %v505 = vadd.f32 0.0, %v504
      %v506 = vpop.f32.mrf.mxu0
      %507 = vdwg.mxu0
      %v508 = vld [vmem:[%s2] sm:$0xff]
      %v509 = vld [vmem:[%s2 + $0x8] sm:$0xff]
      %v510 = vld [vmem:[%s2 + $0x10] sm:$0xff]
      %v511 = vld [vmem:[%s2 + $0x18] sm:$0xff]
      %v512 = vld [vmem:[%s2 + $0x20] sm:$0xff]
      %v513 = vld [vmem:[%s2 + $0x28] sm:$0xff]
      %v514 = vld [vmem:[%s2 + $0x30] sm:$0xff]
      %v515 = vld [vmem:[%s2 + $0x38] sm:$0xff]
      %v517 = vsel %vm335, %v317, 0
      %v520 = vsel %vm335, %v318, 0
      %v523 = vsel %vm335, %v319, 0
      %525 = vmatprep.subr.mxu0 0.0
      %526 = vmatpush1.msra.mxu0 0.0
      %527 = vmatprep.subr.mxu0 0.0
      %528 = vmatpush1.msra.mxu0 0.0
      %529 = vmatprep.subr.mxu0 0.0
      %530 = vmatpush1.msra.mxu0 0.0
      %531 = vmatprep.subr.mxu0 0.0
      %532 = vmatpush1.msra.mxu0 0.0
      %533 = vmatprep.subr.mxu0 0.0
      %534 = vmatpush1.msra.mxu0 0.0
      %535 = vmatprep.subr.mxu0 0.0
      %536 = vmatpush1.msra.mxu0 0.0
      %537 = vmatprep.subr.mxu0 0.0
      %538 = vmatpush1.msra.mxu0 0.0
      %539 = vmatprep.subr.mxu0 0.0
      %540 = vmatpush1.msra.mxu0 0.0
      %541 = vmatprep.subr.mxu0 0.0
      %542 = vmatpush1.msra.mxu0 0.0
      %543 = vmatprep.subr.mxu0 0.0
      %544 = vmatpush1.msra.mxu0 0.0
      %545 = vmatprep.subr.mxu0 0.0
      %546 = vmatpush1.msra.mxu0 0.0
      %547 = vmatprep.subr.mxu0 0.0
      %548 = vmatpush1.msra.mxu0 0.0
      %549 = vmatprep.subr.mxu0 %v515
      %550 = vmatpush1.msra.mxu0 %v514
      %551 = vmatprep.subr.mxu0 %v513
      %552 = vmatpush1.msra.mxu0 %v512
      %553 = vmatprep.subr.mxu0 %v511
      %554 = vmatpush1.msra.mxu0 %v510
      %555 = vmatprep.subr.mxu0 %v509
      %556 = vmatpush1.msra.mxu0 %v508
      %557 = vmatprep.subr.mxu0 0.0
      %558 = vmatpush2.msra.mxu0 0.0
      %559 = vmatprep.subr.mxu0 0.0
      %560 = vmatpush2.msra.mxu0 0.0
      %561 = vmatprep.subr.mxu0 0.0
      %562 = vmatpush2.msra.mxu0 0.0
      %563 = vmatprep.subr.mxu0 0.0
      %564 = vmatpush2.msra.mxu0 0.0
      %565 = vmatprep.subr.mxu0 0.0
      %566 = vmatpush2.msra.mxu0 0.0
      %567 = vmatprep.subr.mxu0 0.0
      %568 = vmatpush2.msra.mxu0 0.0
      %569 = vmatprep.subr.mxu0 0.0
      %570 = vmatpush2.msra.mxu0 0.0
      %571 = vmatprep.subr.mxu0 0.0
      %572 = vmatpush2.msra.mxu0 0.0
      %573 = vmatprep.subr.mxu0 0.0
      %574 = vmatpush2.msra.mxu0 0.0
      %575 = vmatprep.subr.mxu0 0.0
      %576 = vmatpush2.msra.mxu0 0.0
      %577 = vmatprep.subr.mxu0 0.0
      %578 = vmatpush2.msra.mxu0 0.0
      %579 = vmatprep.subr.mxu0 0.0
      %580 = vmatpush2.msra.mxu0 0.0
      %581 = vmatprep.subr.mxu0 0.0
      %582 = vmatpush2.msra.mxu0 0.0
      %583 = vmatprep.subr.mxu0 0.0
      %584 = vmatpush2.msra.mxu0 0.0
      %585 = vmatprep.subr.mxu0 0.0
      %586 = vmatpush2.msra.mxu0 0.0
      %587 = vmatprep.subr.mxu0 0.0
      %588 = vmatpush2.msra.mxu0 0.0
      %589 = vmatprep.mubr.f32.mxu0 0.0
      %590 = vmatmul.mubr.f32.gmra.mxu0 %v517
      %v591 = vpop.f32.mrf.mxu0
      %v592 = vadd.f32 0.0, %v591
      %v593 = vpop.f32.mrf.mxu0
      %v594 = vadd.f32 0.0, %v593
      %595 = vmatprep.mubr.f32.mxu0 0.0
      %596 = vmatmul.mubr.f32.gmra.mxu0 %v520
      %v597 = vpop.f32.mrf.mxu0
      %v598 = vadd.f32 0.0, %v597
      %v599 = vpop.f32.mrf.mxu0
      %v600 = vadd.f32 0.0, %v599
      %601 = vmatprep.mubr.f32.mxu0 0.0
      %602 = vmatmul.mubr.f32.gmra.mxu0 %v523
      %v603 = vpop.f32.mrf.mxu0
      %v604 = vadd.f32 0.0, %v603
      %v605 = vpop.f32.mrf.mxu0
      %v606 = vadd.f32 0.0, %v605
      %607 = vdwg.mxu0
      %v608 = vld [vmem:[%s3] sm:$0xff]
      %v609 = vld [vmem:[%s3 + $0x8] sm:$0xff]
      %v610 = vld [vmem:[%s3 + $0x10] sm:$0xff]
      %v611 = vld [vmem:[%s3 + $0x18] sm:$0xff]
      %v613 = vsel %vm335, %v320, 0
      %v616 = vsel %vm335, %v321, 0
      %v619 = vsel %vm335, %v322, 0
      %621 = vmatprep.subr.mxu0 0.0
      %622 = vmatpush1.msra.mxu0 0.0
      %623 = vmatprep.subr.mxu0 0.0
      %624 = vmatpush1.msra.mxu0 0.0
      %625 = vmatprep.subr.mxu0 0.0
      %626 = vmatpush1.msra.mxu0 0.0
      %627 = vmatprep.subr.mxu0 0.0
      %628 = vmatpush1.msra.mxu0 0.0
      %629 = vmatprep.subr.mxu0 0.0
      %630 = vmatpush1.msra.mxu0 0.0
      %631 = vmatprep.subr.mxu0 0.0
      %632 = vmatpush1.msra.mxu0 0.0
      %633 = vmatprep.subr.mxu0 0.0
      %634 = vmatpush1.msra.mxu0 0.0
      %635 = vmatprep.subr.mxu0 0.0
      %636 = vmatpush1.msra.mxu0 0.0
      %637 = vmatprep.subr.mxu0 0.0
      %638 = vmatpush1.msra.mxu0 0.0
      %639 = vmatprep.subr.mxu0 0.0
      %640 = vmatpush1.msra.mxu0 0.0
      %641 = vmatprep.subr.mxu0 0.0
      %642 = vmatpush1.msra.mxu0 0.0
      %643 = vmatprep.subr.mxu0 0.0
      %644 = vmatpush1.msra.mxu0 0.0
      %645 = vmatprep.subr.mxu0 0.0
      %646 = vmatpush1.msra.mxu0 %v611
      %647 = vmatprep.subr.mxu0 0.0
      %648 = vmatpush1.msra.mxu0 %v610
      %649 = vmatprep.subr.mxu0 0.0
      %650 = vmatpush1.msra.mxu0 %v609
      %651 = vmatprep.subr.mxu0 0.0
      %652 = vmatpush1.msra.mxu0 %v608
      %653 = vmatprep.subr.mxu0 0.0
      %654 = vmatpush2.msra.mxu0 0.0
      %655 = vmatprep.subr.mxu0 0.0
      %656 = vmatpush2.msra.mxu0 0.0
      %657 = vmatprep.subr.mxu0 0.0
      %658 = vmatpush2.msra.mxu0 0.0
      %659 = vmatprep.subr.mxu0 0.0
      %660 = vmatpush2.msra.mxu0 0.0
      %661 = vmatprep.subr.mxu0 0.0
      %662 = vmatpush2.msra.mxu0 0.0
      %663 = vmatprep.subr.mxu0 0.0
      %664 = vmatpush2.msra.mxu0 0.0
      %665 = vmatprep.subr.mxu0 0.0
      %666 = vmatpush2.msra.mxu0 0.0
      %667 = vmatprep.subr.mxu0 0.0
      %668 = vmatpush2.msra.mxu0 0.0
      %669 = vmatprep.subr.mxu0 0.0
      %670 = vmatpush2.msra.mxu0 0.0
      %671 = vmatprep.subr.mxu0 0.0
      %672 = vmatpush2.msra.mxu0 0.0
      %673 = vmatprep.subr.mxu0 0.0
      %674 = vmatpush2.msra.mxu0 0.0
      %675 = vmatprep.subr.mxu0 0.0
      %676 = vmatpush2.msra.mxu0 0.0
      %677 = vmatprep.subr.mxu0 0.0
      %678 = vmatpush2.msra.mxu0 0.0
      %679 = vmatprep.subr.mxu0 0.0
      %680 = vmatpush2.msra.mxu0 0.0
      %681 = vmatprep.subr.mxu0 0.0
      %682 = vmatpush2.msra.mxu0 0.0
      %683 = vmatprep.subr.mxu0 0.0
      %684 = vmatpush2.msra.mxu0 0.0
      %685 = vmatprep.mubr.f32.mxu0 0.0
      %686 = vmatmul.mubr.f32.gmra.mxu0 %v613
      %v687 = vpop.f32.mrf.mxu0
      %v688 = vadd.f32 0.0, %v687
      %v689 = vpop.f32.mrf.mxu0
      %690 = vmatprep.mubr.f32.mxu0 0.0
      %691 = vmatmul.mubr.f32.gmra.mxu0 %v616
      %v692 = vpop.f32.mrf.mxu0
      %v693 = vadd.f32 0.0, %v692
      %v694 = vpop.f32.mrf.mxu0
      %695 = vmatprep.mubr.f32.mxu0 0.0
      %696 = vmatmul.mubr.f32.gmra.mxu0 %v619
      %v697 = vpop.f32.mrf.mxu0
      %v698 = vadd.f32 0.0, %v697
      %v699 = vpop.f32.mrf.mxu0
      %700 = vdwg.mxu0
      %v701 = vld [vmem:[%s4] sm:$0x1]
      %v702 = vlaneseq
      %v703 = vshrl.u32 %v702, 7
      %v704 = vsub.s32 0, %v703
      %v705 = vrot.slane %v701, %v704
      %v706 = vadd.f32 %v412, %v705
      %v707 = vadd.f32 %v418, %v705
      %v708 = vadd.f32 %v424, %v705
      %v709 = vadd.f32 %v414, %v592
      %v710 = vadd.f32 %v420, %v598
      %v711 = vadd.f32 %v426, %v604
      %v712 = vld [vmem:[%s4 + $0x1] sm:$0x1]
      %v713 = vlaneseq
      %v714 = vshrl.u32 %v713, 7
      %v715 = vsub.s32 0, %v714
      %v716 = vrot.slane %v712, %v715
      %v717 = vadd.f32 %v709, %v716
      %v718 = vadd.f32 %v710, %v716
      %v719 = vadd.f32 %v711, %v716
      %v720 = vadd.f32 %v495, %v594
      %v721 = vadd.f32 %v500, %v600
      %v722 = vadd.f32 %v505, %v606
      %v723 = vadd.f32 %v720, %v688
      %v724 = vadd.f32 %v721, %v693
      %v725 = vadd.f32 %v722, %v698
      %v726 = vld [vmem:[%s4 + $0x2] sm:$0x1]
      %v727 = vlaneseq
      %v728 = vshrl.u32 %v727, 7
      %v729 = vsub.s32 0, %v728
      %v730 = vrot.slane %v726, %v729
      %v731 = vadd.f32 %v723, %v730
      %v732 = vadd.f32 %v724, %v730
      %v733 = vadd.f32 %v725, %v730
      %v734 = vmax.f32 %v706, 0.0
      %v735 = vmax.f32 %v717, 0.0
      %v736 = vmax.f32 %v731, 0.0
      %v737 = vadd.f32 %v734, 1e-09
      %v738 = vadd.f32 %v735, 1e-09
      %v739 = vadd.f32 %v736, 1e-09
      %v740 = vmul.f32 %v737, %v737
      %v741 = vmul.f32 %v738, %v738
      %v742 = vmul.f32 %v739, %v739
      %743 = vadd.xlane.f32.xlu0 %v740
      %v744 = vpop.xlane.xlu0 %743
      %745 = vadd.xlane.f32.xlu0 %v741
      %v746 = vpop.xlane.xlu0 %745
      %747 = vadd.xlane.f32.xlu0 %v742
      %v748 = vpop.xlane.xlu0 %747
      %v749 = vmax.f32 %v744, 1e-20
      %v750 = vmax.f32 %v746, 1e-20
      %v751 = vmax.f32 %v748, 1e-20
      %v752 = vrsqrt.pop %v749
      %v753 = vrsqrt.pop %v750
      %v754 = vrsqrt.pop %v751
      %v755 = vmul.f32 %v737, %v752
      %v756 = vmul.f32 %v738, %v753
      %v757 = vmul.f32 %v739, %v754
      %v758 = vmax.f32 %v707, 0.0
      %v759 = vmax.f32 %v708, 0.0
      %v760 = vmax.f32 %v718, 0.0
      %v761 = vmax.f32 %v719, 0.0
      %v762 = vmax.f32 %v732, 0.0
      %v763 = vmax.f32 %v733, 0.0
      %v764 = vadd.f32 %v758, 1e-09
      %v765 = vadd.f32 %v759, 1e-09
      %v766 = vadd.f32 %v760, 1e-09
      %v767 = vadd.f32 %v761, 1e-09
      %v768 = vadd.f32 %v762, 1e-09
      %v769 = vadd.f32 %v763, 1e-09
      %v770 = vmul.f32 %v764, %v764
      %v771 = vmul.f32 %v765, %v765
      %v772 = vmul.f32 %v766, %v766
      %v773 = vmul.f32 %v767, %v767
      %v774 = vmul.f32 %v768, %v768
      %v775 = vmul.f32 %v769, %v769
      %776 = vadd.xlane.f32.xlu0 %v770
      %v777 = vpop.xlane.xlu0 %776
      %778 = vadd.xlane.f32.xlu0 %v771
      %v779 = vpop.xlane.xlu0 %778
      %780 = vadd.xlane.f32.xlu0 %v772
      %v781 = vpop.xlane.xlu0 %780
      %782 = vadd.xlane.f32.xlu0 %v773
      %v783 = vpop.xlane.xlu0 %782
      %784 = vadd.xlane.f32.xlu0 %v774
      %v785 = vpop.xlane.xlu0 %784
      %786 = vadd.xlane.f32.xlu0 %v775
      %v787 = vpop.xlane.xlu0 %786
      %v788 = vmax.f32 %v777, 1e-20
      %v789 = vmax.f32 %v779, 1e-20
      %v790 = vmax.f32 %v781, 1e-20
      %v791 = vmax.f32 %v783, 1e-20
      %v792 = vmax.f32 %v785, 1e-20
      %v793 = vmax.f32 %v787, 1e-20
      %v794 = vrsqrt.pop %v788
      %v795 = vrsqrt.pop %v789
      %v796 = vrsqrt.pop %v790
      %v797 = vrsqrt.pop %v791
      %v798 = vrsqrt.pop %v792
      %v799 = vrsqrt.pop %v793
      %v800 = vmul.f32 %v764, %v794
      %v801 = vmul.f32 %v765, %v795
      %v802 = vmul.f32 %v766, %v796
      %v803 = vmul.f32 %v767, %v797
      %v804 = vmul.f32 %v768, %v798
      %v805 = vmul.f32 %v769, %v799
      %806 = vmatprep.subr.mxu0 0.0
      %807 = vmatpush1.xpose.msra.mxu0 0.0
      %808 = vmatprep.subr.mxu0 0.0
      %809 = vmatpush1.xpose.msra.mxu0 0.0
      %810 = vmatprep.subr.mxu0 0.0
      %811 = vmatpush1.xpose.msra.mxu0 0.0
      %812 = vmatprep.subr.mxu0 0.0
      %813 = vmatpush1.xpose.msra.mxu0 0.0
      %814 = vmatprep.subr.mxu0 0.0
      %815 = vmatpush1.xpose.msra.mxu0 0.0
      %816 = vmatprep.subr.mxu0 0.0
      %817 = vmatpush1.xpose.msra.mxu0 0.0
      %818 = vmatprep.subr.mxu0 0.0
      %819 = vmatpush1.xpose.msra.mxu0 0.0
      %820 = vmatprep.subr.mxu0 0.0
      %821 = vmatpush1.xpose.msra.mxu0 0.0
      %822 = vmatprep.subr.mxu0 0.0
      %823 = vmatpush1.xpose.msra.mxu0 0.0
      %824 = vmatprep.subr.mxu0 0.0
      %825 = vmatpush1.xpose.msra.mxu0 0.0
      %826 = vmatprep.subr.mxu0 0.0
      %827 = vmatpush1.xpose.msra.mxu0 %v805
      %828 = vmatprep.subr.mxu0 0.0
      %829 = vmatpush1.xpose.msra.mxu0 %v804
      %830 = vmatprep.subr.mxu0 0.0
      %831 = vmatpush1.xpose.msra.mxu0 %v803
      %832 = vmatprep.subr.mxu0 0.0
      %833 = vmatpush1.xpose.msra.mxu0 %v802
      %834 = vmatprep.subr.mxu0 0.0
      %835 = vmatpush1.xpose.msra.mxu0 %v801
      %836 = vmatprep.subr.mxu0 0.0
      %837 = vmatpush1.xpose.msra.mxu0 %v800
      %838 = vmatprep.subr.mxu0 0.0
      %839 = vmatpush2.xpose.msra.mxu0 0.0
      %840 = vmatprep.subr.mxu0 0.0
      %841 = vmatpush2.xpose.msra.mxu0 0.0
      %842 = vmatprep.subr.mxu0 0.0
      %843 = vmatpush2.xpose.msra.mxu0 0.0
      %844 = vmatprep.subr.mxu0 0.0
      %845 = vmatpush2.xpose.msra.mxu0 0.0
      %846 = vmatprep.subr.mxu0 0.0
      %847 = vmatpush2.xpose.msra.mxu0 0.0
      %848 = vmatprep.subr.mxu0 0.0
      %849 = vmatpush2.xpose.msra.mxu0 0.0
      %850 = vmatprep.subr.mxu0 0.0
      %851 = vmatpush2.xpose.msra.mxu0 0.0
      %852 = vmatprep.subr.mxu0 0.0
      %853 = vmatpush2.xpose.msra.mxu0 0.0
      %854 = vmatprep.subr.mxu0 0.0
      %855 = vmatpush2.xpose.msra.mxu0 0.0
      %856 = vmatprep.subr.mxu0 0.0
      %857 = vmatpush2.xpose.msra.mxu0 0.0
      %858 = vmatprep.subr.mxu0 0.0
      %859 = vmatpush2.xpose.msra.mxu0 0.0
      %860 = vmatprep.subr.mxu0 0.0
      %861 = vmatpush2.xpose.msra.mxu0 0.0
      %862 = vmatprep.subr.mxu0 0.0
      %863 = vmatpush2.xpose.msra.mxu0 0.0
      %864 = vmatprep.subr.mxu0 0.0
      %865 = vmatpush2.xpose.msra.mxu0 0.0
      %866 = vmatprep.subr.mxu0 0.0
      %867 = vmatpush2.xpose.msra.mxu0 0.0
      %868 = vmatprep.subr.mxu0 0.0
      %869 = vmatpush2.xpose.msra.mxu0 0.0
      %870 = vmatprep.mubr.f32.mxu0 0.0
      %871 = vmatmul.mubr.f32.gmra.mxu0 %v755
      %v872 = vpop.f32.mrf.mxu0
      %v873 = vadd.f32 0.0, %v872
      %v874 = vpop.f32.mrf.mxu0
      %875 = vmatprep.mubr.f32.mxu0 0.0
      %876 = vmatmul.mubr.f32.gmra.mxu0 %v756
      %v877 = vpop.f32.mrf.mxu0
      %v878 = vadd.f32 0.0, %v877
      %v879 = vpop.f32.mrf.mxu0
      %880 = vmatprep.mubr.f32.mxu0 0.0
      %881 = vmatmul.mubr.f32.gmra.mxu0 %v757
      %v882 = vpop.f32.mrf.mxu0
      %v883 = vadd.f32 0.0, %v882
      %v884 = vpop.f32.mrf.mxu0
      %885 = vdwg.mxu0
      %v886 = vld [vmem:[%s309] sm:$0xff]
      %v887 = vld [vmem:[%s309 + $0x8] sm:$0xff]
      %v888 = vld [vmem:[%s309 + $0x10] sm:$0xff]
      %v889 = vld [vmem:[%s309 + $0x18] sm:$0xff]
      %v890 = vld [vmem:[%s309 + $0x20] sm:$0xff]
      %v891 = vld [vmem:[%s309 + $0x28] sm:$0xff]
      %v892 = vsub.f32 %v873, 1.0
      %v893 = vsub.f32 %v878, 1.0
      %v894 = vsub.f32 %v883, 1.0
      %v895 = vmul.f32 %v892, %v892
      %v896 = vmul.f32 %v893, %v893
      %v897 = vmul.f32 %v894, %v894
      %v898 = vmul.f32 %v895, -500000.0
      %v899 = vmul.f32 %v896, -500000.0
      %v900 = vmul.f32 %v897, -500000.0
      %v901 = vmul.f32 %v898, 1.442695
      %v902 = vpow.pop %v901
      %v903 = vmul.f32 %v899, 1.442695
      %v904 = vpow.pop %v903
      %v905 = vmul.f32 %v900, 1.442695
      %v906 = vpow.pop %v905
      %v907 = vsub.f32 %v873, 0.9
      %v908 = vsub.f32 %v878, 0.9
      %v909 = vsub.f32 %v883, 0.9
      %v910 = vmul.f32 %v907, %v907
      %v911 = vmul.f32 %v908, %v908
      %v912 = vmul.f32 %v909, %v909
      %v913 = vmul.f32 %v910, -50.0
      %v914 = vmul.f32 %v911, -50.0
      %v915 = vmul.f32 %v912, -50.0
      %v916 = vmul.f32 %v913, 1.442695
      %v917 = vpow.pop %v916
      %v918 = vmul.f32 %v914, 1.442695
      %v919 = vpow.pop %v918
      %v920 = vmul.f32 %v915, 1.442695
      %v921 = vpow.pop %v920
      %v922 = vmul.f32 %v873, -20.0
      %v923 = vmul.f32 %v878, -20.0
      %v924 = vmul.f32 %v883, -20.0
      %v925 = vmul.f32 %v922, 1.442695
      %v926 = vpow.pop %v925
      %v927 = vmul.f32 %v923, 1.442695
      %v928 = vpow.pop %v927
      %v929 = vmul.f32 %v924, 1.442695
      %v930 = vpow.pop %v929
      %vm931 = vcmask 392192
      %v933 = vsel %vm931, %v902, 0
      %v936 = vsel %vm931, %v904, 0
      %v939 = vsel %vm931, %v906, 0
      %941 = vmatprep.subr.mxu0 0.0
      %942 = vmatpush1.msra.mxu0 0.0
      %943 = vmatprep.subr.mxu0 0.0
      %944 = vmatpush1.msra.mxu0 0.0
      %945 = vmatprep.subr.mxu0 0.0
      %946 = vmatpush1.msra.mxu0 0.0
      %947 = vmatprep.subr.mxu0 0.0
      %948 = vmatpush1.msra.mxu0 0.0
      %949 = vmatprep.subr.mxu0 0.0
      %950 = vmatpush1.msra.mxu0 0.0
      %951 = vmatprep.subr.mxu0 0.0
      %952 = vmatpush1.msra.mxu0 0.0
      %953 = vmatprep.subr.mxu0 0.0
      %954 = vmatpush1.msra.mxu0 0.0
      %955 = vmatprep.subr.mxu0 0.0
      %956 = vmatpush1.msra.mxu0 0.0
      %957 = vmatprep.subr.mxu0 0.0
      %958 = vmatpush1.msra.mxu0 0.0
      %959 = vmatprep.subr.mxu0 0.0
      %960 = vmatpush1.msra.mxu0 0.0
      %961 = vmatprep.subr.mxu0 0.0
      %962 = vmatpush1.msra.mxu0 %v891
      %963 = vmatprep.subr.mxu0 0.0
      %964 = vmatpush1.msra.mxu0 %v890
      %965 = vmatprep.subr.mxu0 0.0
      %966 = vmatpush1.msra.mxu0 %v889
      %967 = vmatprep.subr.mxu0 0.0
      %968 = vmatpush1.msra.mxu0 %v888
      %969 = vmatprep.subr.mxu0 0.0
      %970 = vmatpush1.msra.mxu0 %v887
      %971 = vmatprep.subr.mxu0 0.0
      %972 = vmatpush1.msra.mxu0 %v886
      %973 = vmatprep.subr.mxu0 0.0
      %974 = vmatpush2.msra.mxu0 0.0
      %975 = vmatprep.subr.mxu0 0.0
      %976 = vmatpush2.msra.mxu0 0.0
      %977 = vmatprep.subr.mxu0 0.0
      %978 = vmatpush2.msra.mxu0 0.0
      %979 = vmatprep.subr.mxu0 0.0
      %980 = vmatpush2.msra.mxu0 0.0
      %981 = vmatprep.subr.mxu0 0.0
      %982 = vmatpush2.msra.mxu0 0.0
      %983 = vmatprep.subr.mxu0 0.0
      %984 = vmatpush2.msra.mxu0 0.0
      %985 = vmatprep.subr.mxu0 0.0
      %986 = vmatpush2.msra.mxu0 0.0
      %987 = vmatprep.subr.mxu0 0.0
      %988 = vmatpush2.msra.mxu0 0.0
      %989 = vmatprep.subr.mxu0 0.0
      %990 = vmatpush2.msra.mxu0 0.0
      %991 = vmatprep.subr.mxu0 0.0
      %992 = vmatpush2.msra.mxu0 0.0
      %993 = vmatprep.subr.mxu0 0.0
      %994 = vmatpush2.msra.mxu0 0.0
      %995 = vmatprep.subr.mxu0 0.0
      %996 = vmatpush2.msra.mxu0 0.0
      %997 = vmatprep.subr.mxu0 0.0
      %998 = vmatpush2.msra.mxu0 0.0
      %999 = vmatprep.subr.mxu0 0.0
      %1000 = vmatpush2.msra.mxu0 0.0
      %1001 = vmatprep.subr.mxu0 0.0
      %1002 = vmatpush2.msra.mxu0 0.0
      %1003 = vmatprep.subr.mxu0 0.0
      %1004 = vmatpush2.msra.mxu0 0.0
      %1005 = vmatprep.mubr.f32.mxu0 0.0
      %1006 = vmatmul.mubr.f32.gmra.mxu0 %v933
      %v1007 = vpop.f32.mrf.mxu0
      %v1008 = vadd.f32 0.0, %v1007
      %v1009 = vpop.f32.mrf.mxu0
      %1010 = vmatprep.mubr.f32.mxu0 0.0
      %1011 = vmatmul.mubr.f32.gmra.mxu0 %v936
      %v1012 = vpop.f32.mrf.mxu0
      %v1013 = vadd.f32 0.0, %v1012
      %v1014 = vpop.f32.mrf.mxu0
      %1015 = vmatprep.mubr.f32.mxu0 0.0
      %1016 = vmatmul.mubr.f32.gmra.mxu0 %v939
      %v1017 = vpop.f32.mrf.mxu0
      %v1018 = vadd.f32 0.0, %v1017
      %v1019 = vpop.f32.mrf.mxu0
      %1020 = vdwg.mxu0
      %v1022 = vsel %vm931, %v917, 0
      %v1025 = vsel %vm931, %v919, 0
      %v1028 = vsel %vm931, %v921, 0
      %1030 = vmatprep.subr.mxu0 0.0
      %1031 = vmatpush1.msra.mxu0 0.0
      %1032 = vmatprep.subr.mxu0 0.0
      %1033 = vmatpush1.msra.mxu0 0.0
      %1034 = vmatprep.subr.mxu0 0.0
      %1035 = vmatpush1.msra.mxu0 0.0
      %1036 = vmatprep.subr.mxu0 0.0
      %1037 = vmatpush1.msra.mxu0 0.0
      %1038 = vmatprep.subr.mxu0 0.0
      %1039 = vmatpush1.msra.mxu0 0.0
      %1040 = vmatprep.subr.mxu0 0.0
      %1041 = vmatpush1.msra.mxu0 0.0
      %1042 = vmatprep.subr.mxu0 0.0
      %1043 = vmatpush1.msra.mxu0 0.0
      %1044 = vmatprep.subr.mxu0 0.0
      %1045 = vmatpush1.msra.mxu0 0.0
      %1046 = vmatprep.subr.mxu0 0.0
      %1047 = vmatpush1.msra.mxu0 0.0
      %1048 = vmatprep.subr.mxu0 0.0
      %1049 = vmatpush1.msra.mxu0 0.0
      %1050 = vmatprep.subr.mxu0 0.0
      %1051 = vmatpush1.msra.mxu0 %v891
      %1052 = vmatprep.subr.mxu0 0.0
      %1053 = vmatpush1.msra.mxu0 %v890
      %1054 = vmatprep.subr.mxu0 0.0
      %1055 = vmatpush1.msra.mxu0 %v889
      %1056 = vmatprep.subr.mxu0 0.0
      %1057 = vmatpush1.msra.mxu0 %v888
      %1058 = vmatprep.subr.mxu0 0.0
      %1059 = vmatpush1.msra.mxu0 %v887
      %1060 = vmatprep.subr.mxu0 0.0
      %1061 = vmatpush1.msra.mxu0 %v886
      %1062 = vmatprep.subr.mxu0 0.0
      %1063 = vmatpush2.msra.mxu0 0.0
      %1064 = vmatprep.subr.mxu0 0.0
      %1065 = vmatpush2.msra.mxu0 0.0
      %1066 = vmatprep.subr.mxu0 0.0
      %1067 = vmatpush2.msra.mxu0 0.0
      %1068 = vmatprep.subr.mxu0 0.0
      %1069 = vmatpush2.msra.mxu0 0.0
      %1070 = vmatprep.subr.mxu0 0.0
      %1071 = vmatpush2.msra.mxu0 0.0
      %1072 = vmatprep.subr.mxu0 0.0
      %1073 = vmatpush2.msra.mxu0 0.0
      %1074 = vmatprep.subr.mxu0 0.0
      %1075 = vmatpush2.msra.mxu0 0.0
      %1076 = vmatprep.subr.mxu0 0.0
      %1077 = vmatpush2.msra.mxu0 0.0
      %1078 = vmatprep.subr.mxu0 0.0
      %1079 = vmatpush2.msra.mxu0 0.0
      %1080 = vmatprep.subr.mxu0 0.0
      %1081 = vmatpush2.msra.mxu0 0.0
      %1082 = vmatprep.subr.mxu0 0.0
      %1083 = vmatpush2.msra.mxu0 0.0
      %1084 = vmatprep.subr.mxu0 0.0
      %1085 = vmatpush2.msra.mxu0 0.0
      %1086 = vmatprep.subr.mxu0 0.0
      %1087 = vmatpush2.msra.mxu0 0.0
      %1088 = vmatprep.subr.mxu0 0.0
      %1089 = vmatpush2.msra.mxu0 0.0
      %1090 = vmatprep.subr.mxu0 0.0
      %1091 = vmatpush2.msra.mxu0 0.0
      %1092 = vmatprep.subr.mxu0 0.0
      %1093 = vmatpush2.msra.mxu0 0.0
      %1094 = vmatprep.mubr.f32.mxu0 0.0
      %1095 = vmatmul.mubr.f32.gmra.mxu0 %v1022
      %v1096 = vpop.f32.mrf.mxu0
      %v1097 = vadd.f32 0.0, %v1096
      %v1098 = vpop.f32.mrf.mxu0
      %1099 = vmatprep.mubr.f32.mxu0 0.0
      %1100 = vmatmul.mubr.f32.gmra.mxu0 %v1025
      %v1101 = vpop.f32.mrf.mxu0
      %v1102 = vadd.f32 0.0, %v1101
      %v1103 = vpop.f32.mrf.mxu0
      %1104 = vmatprep.mubr.f32.mxu0 0.0
      %1105 = vmatmul.mubr.f32.gmra.mxu0 %v1028
      %v1106 = vpop.f32.mrf.mxu0
      %v1107 = vadd.f32 0.0, %v1106
      %v1108 = vpop.f32.mrf.mxu0
      %1109 = vdwg.mxu0
      %v1110 = vmul.f32 %v917, %v926
      %v1111 = vmul.f32 %v919, %v928
      %v1112 = vmul.f32 %v921, %v930
      %v1114 = vsel %vm931, %v1110, 0
      %v1117 = vsel %vm931, %v1111, 0
      %v1120 = vsel %vm931, %v1112, 0
      %1122 = vmatprep.subr.mxu0 0.0
      %1123 = vmatpush1.msra.mxu0 0.0
      %1124 = vmatprep.subr.mxu0 0.0
      %1125 = vmatpush1.msra.mxu0 0.0
      %1126 = vmatprep.subr.mxu0 0.0
      %1127 = vmatpush1.msra.mxu0 0.0
      %1128 = vmatprep.subr.mxu0 0.0
      %1129 = vmatpush1.msra.mxu0 0.0
      %1130 = vmatprep.subr.mxu0 0.0
      %1131 = vmatpush1.msra.mxu0 0.0
      %1132 = vmatprep.subr.mxu0 0.0
      %1133 = vmatpush1.msra.mxu0 0.0
      %1134 = vmatprep.subr.mxu0 0.0
      %1135 = vmatpush1.msra.mxu0 0.0
      %1136 = vmatprep.subr.mxu0 0.0
      %1137 = vmatpush1.msra.mxu0 0.0
      %1138 = vmatprep.subr.mxu0 0.0
      %1139 = vmatpush1.msra.mxu0 0.0
      %1140 = vmatprep.subr.mxu0 0.0
      %1141 = vmatpush1.msra.mxu0 0.0
      %1142 = vmatprep.subr.mxu0 0.0
      %1143 = vmatpush1.msra.mxu0 %v891
      %1144 = vmatprep.subr.mxu0 0.0
      %1145 = vmatpush1.msra.mxu0 %v890
      %1146 = vmatprep.subr.mxu0 0.0
      %1147 = vmatpush1.msra.mxu0 %v889
      %1148 = vmatprep.subr.mxu0 0.0
      %1149 = vmatpush1.msra.mxu0 %v888
      %1150 = vmatprep.subr.mxu0 0.0
      %1151 = vmatpush1.msra.mxu0 %v887
      %1152 = vmatprep.subr.mxu0 0.0
      %1153 = vmatpush1.msra.mxu0 %v886
      %1154 = vmatprep.subr.mxu0 0.0
      %1155 = vmatpush2.msra.mxu0 0.0
      %1156 = vmatprep.subr.mxu0 0.0
      %1157 = vmatpush2.msra.mxu0 0.0
      %1158 = vmatprep.subr.mxu0 0.0
      %1159 = vmatpush2.msra.mxu0 0.0
      %1160 = vmatprep.subr.mxu0 0.0
      %1161 = vmatpush2.msra.mxu0 0.0
      %1162 = vmatprep.subr.mxu0 0.0
      %1163 = vmatpush2.msra.mxu0 0.0
      %1164 = vmatprep.subr.mxu0 0.0
      %1165 = vmatpush2.msra.mxu0 0.0
      %1166 = vmatprep.subr.mxu0 0.0
      %1167 = vmatpush2.msra.mxu0 0.0
      %1168 = vmatprep.subr.mxu0 0.0
      %1169 = vmatpush2.msra.mxu0 0.0
      %1170 = vmatprep.subr.mxu0 0.0
      %1171 = vmatpush2.msra.mxu0 0.0
      %1172 = vmatprep.subr.mxu0 0.0
      %1173 = vmatpush2.msra.mxu0 0.0
      %1174 = vmatprep.subr.mxu0 0.0
      %1175 = vmatpush2.msra.mxu0 0.0
      %1176 = vmatprep.subr.mxu0 0.0
      %1177 = vmatpush2.msra.mxu0 0.0
      %1178 = vmatprep.subr.mxu0 0.0
      %1179 = vmatpush2.msra.mxu0 0.0
      %1180 = vmatprep.subr.mxu0 0.0
      %1181 = vmatpush2.msra.mxu0 0.0
      %1182 = vmatprep.subr.mxu0 0.0
      %1183 = vmatpush2.msra.mxu0 0.0
      %1184 = vmatprep.subr.mxu0 0.0
      %1185 = vmatpush2.msra.mxu0 0.0
      %1186 = vmatprep.mubr.f32.mxu0 0.0
      %1187 = vmatmul.mubr.f32.gmra.mxu0 %v1114
      %v1188 = vpop.f32.mrf.mxu0
      %v1189 = vadd.f32 0.0, %v1188
      %v1190 = vpop.f32.mrf.mxu0
      %1191 = vmatprep.mubr.f32.mxu0 0.0
      %1192 = vmatmul.mubr.f32.gmra.mxu0 %v1117
      %v1193 = vpop.f32.mrf.mxu0
      %v1194 = vadd.f32 0.0, %v1193
      %v1195 = vpop.f32.mrf.mxu0
      %1196 = vmatprep.mubr.f32.mxu0 0.0
      %1197 = vmatmul.mubr.f32.gmra.mxu0 %v1120
      %v1198 = vpop.f32.mrf.mxu0
      %v1199 = vadd.f32 0.0, %v1198
      %v1200 = vpop.f32.mrf.mxu0
      %1201 = vdwg.mxu0
      %v1202 = vmul.f32 %v1189, 8886111.0
      %v1203 = vmul.f32 %v1194, 8886111.0
      %v1204 = vmul.f32 %v1199, 8886111.0
      %v1205 = vmul.f32 %v1110, %v926
      %v1206 = vmul.f32 %v1111, %v928
      %v1207 = vmul.f32 %v1112, %v930
      %v1209 = vsel %vm931, %v1205, 0
      %v1212 = vsel %vm931, %v1206, 0
      %v1215 = vsel %vm931, %v1207, 0
      %1217 = vmatprep.subr.mxu0 0.0
      %1218 = vmatpush1.msra.mxu0 0.0
      %1219 = vmatprep.subr.mxu0 0.0
      %1220 = vmatpush1.msra.mxu0 0.0
      %1221 = vmatprep.subr.mxu0 0.0
      %1222 = vmatpush1.msra.mxu0 0.0
      %1223 = vmatprep.subr.mxu0 0.0
      %1224 = vmatpush1.msra.mxu0 0.0
      %1225 = vmatprep.subr.mxu0 0.0
      %1226 = vmatpush1.msra.mxu0 0.0
      %1227 = vmatprep.subr.mxu0 0.0
      %1228 = vmatpush1.msra.mxu0 0.0
      %1229 = vmatprep.subr.mxu0 0.0
      %1230 = vmatpush1.msra.mxu0 0.0
      %1231 = vmatprep.subr.mxu0 0.0
      %1232 = vmatpush1.msra.mxu0 0.0
      %1233 = vmatprep.subr.mxu0 0.0
      %1234 = vmatpush1.msra.mxu0 0.0
      %1235 = vmatprep.subr.mxu0 0.0
      %1236 = vmatpush1.msra.mxu0 0.0
      %1237 = vmatprep.subr.mxu0 0.0
      %1238 = vmatpush1.msra.mxu0 %v891
      %1239 = vmatprep.subr.mxu0 0.0
      %1240 = vmatpush1.msra.mxu0 %v890
      %1241 = vmatprep.subr.mxu0 0.0
      %1242 = vmatpush1.msra.mxu0 %v889
      %1243 = vmatprep.subr.mxu0 0.0
      %1244 = vmatpush1.msra.mxu0 %v888
      %1245 = vmatprep.subr.mxu0 0.0
      %1246 = vmatpush1.msra.mxu0 %v887
      %1247 = vmatprep.subr.mxu0 0.0
      %1248 = vmatpush1.msra.mxu0 %v886
      %1249 = vmatprep.subr.mxu0 0.0
      %1250 = vmatpush2.msra.mxu0 0.0
      %1251 = vmatprep.subr.mxu0 0.0
      %1252 = vmatpush2.msra.mxu0 0.0
      %1253 = vmatprep.subr.mxu0 0.0
      %1254 = vmatpush2.msra.mxu0 0.0
      %1255 = vmatprep.subr.mxu0 0.0
      %1256 = vmatpush2.msra.mxu0 0.0
      %1257 = vmatprep.subr.mxu0 0.0
      %1258 = vmatpush2.msra.mxu0 0.0
      %1259 = vmatprep.subr.mxu0 0.0
      %1260 = vmatpush2.msra.mxu0 0.0
      %1261 = vmatprep.subr.mxu0 0.0
      %1262 = vmatpush2.msra.mxu0 0.0
      %1263 = vmatprep.subr.mxu0 0.0
      %1264 = vmatpush2.msra.mxu0 0.0
      %1265 = vmatprep.subr.mxu0 0.0
      %1266 = vmatpush2.msra.mxu0 0.0
      %1267 = vmatprep.subr.mxu0 0.0
      %1268 = vmatpush2.msra.mxu0 0.0
      %1269 = vmatprep.subr.mxu0 0.0
      %1270 = vmatpush2.msra.mxu0 0.0
      %1271 = vmatprep.subr.mxu0 0.0
      %1272 = vmatpush2.msra.mxu0 0.0
      %1273 = vmatprep.subr.mxu0 0.0
      %1274 = vmatpush2.msra.mxu0 0.0
      %1275 = vmatprep.subr.mxu0 0.0
      %1276 = vmatpush2.msra.mxu0 0.0
      %1277 = vmatprep.subr.mxu0 0.0
      %1278 = vmatpush2.msra.mxu0 0.0
      %1279 = vmatprep.subr.mxu0 0.0
      %1280 = vmatpush2.msra.mxu0 0.0
      %1281 = vmatprep.mubr.f32.mxu0 0.0
      %1282 = vmatmul.mubr.f32.gmra.mxu0 %v1209
      %v1283 = vpop.f32.mrf.mxu0
      %v1284 = vadd.f32 0.0, %v1283
      %v1285 = vpop.f32.mrf.mxu0
      %1286 = vmatprep.mubr.f32.mxu0 0.0
      %1287 = vmatmul.mubr.f32.gmra.mxu0 %v1212
      %v1288 = vpop.f32.mrf.mxu0
      %v1289 = vadd.f32 0.0, %v1288
      %v1290 = vpop.f32.mrf.mxu0
      %1291 = vmatprep.mubr.f32.mxu0 0.0
      %1292 = vmatmul.mubr.f32.gmra.mxu0 %v1215
      %v1293 = vpop.f32.mrf.mxu0
      %v1294 = vadd.f32 0.0, %v1293
      %v1295 = vpop.f32.mrf.mxu0
      %1296 = vdwg.mxu0
      %v1297 = vmul.f32 %v1284, 1.4462571e+12
      %v1298 = vmul.f32 %v1289, 1.4462571e+12
      %v1299 = vmul.f32 %v1294, 1.4462571e+12
      %v1300 = vmul.f32 %v1205, %v926
      %v1301 = vmul.f32 %v1206, %v928
      %v1302 = vmul.f32 %v1207, %v930
      %v1304 = vsel %vm931, %v1300, 0
      %v1307 = vsel %vm931, %v1301, 0
      %v1310 = vsel %vm931, %v1302, 0
      %1312 = vmatprep.subr.mxu0 0.0
      %1313 = vmatpush1.msra.mxu0 0.0
      %1314 = vmatprep.subr.mxu0 0.0
      %1315 = vmatpush1.msra.mxu0 0.0
      %1316 = vmatprep.subr.mxu0 0.0
      %1317 = vmatpush1.msra.mxu0 0.0
      %1318 = vmatprep.subr.mxu0 0.0
      %1319 = vmatpush1.msra.mxu0 0.0
      %1320 = vmatprep.subr.mxu0 0.0
      %1321 = vmatpush1.msra.mxu0 0.0
      %1322 = vmatprep.subr.mxu0 0.0
      %1323 = vmatpush1.msra.mxu0 0.0
      %1324 = vmatprep.subr.mxu0 0.0
      %1325 = vmatpush1.msra.mxu0 0.0
      %1326 = vmatprep.subr.mxu0 0.0
      %1327 = vmatpush1.msra.mxu0 0.0
      %1328 = vmatprep.subr.mxu0 0.0
      %1329 = vmatpush1.msra.mxu0 0.0
      %1330 = vmatprep.subr.mxu0 0.0
      %1331 = vmatpush1.msra.mxu0 0.0
      %1332 = vmatprep.subr.mxu0 0.0
      %1333 = vmatpush1.msra.mxu0 %v891
      %1334 = vmatprep.subr.mxu0 0.0
      %1335 = vmatpush1.msra.mxu0 %v890
      %1336 = vmatprep.subr.mxu0 0.0
      %1337 = vmatpush1.msra.mxu0 %v889
      %1338 = vmatprep.subr.mxu0 0.0
      %1339 = vmatpush1.msra.mxu0 %v888
      %1340 = vmatprep.subr.mxu0 0.0
      %1341 = vmatpush1.msra.mxu0 %v887
      %1342 = vmatprep.subr.mxu0 0.0
      %1343 = vmatpush1.msra.mxu0 %v886
      %1344 = vmatprep.subr.mxu0 0.0
      %1345 = vmatpush2.msra.mxu0 0.0
      %1346 = vmatprep.subr.mxu0 0.0
      %1347 = vmatpush2.msra.mxu0 0.0
      %1348 = vmatprep.subr.mxu0 0.0
      %1349 = vmatpush2.msra.mxu0 0.0
      %1350 = vmatprep.subr.mxu0 0.0
      %1351 = vmatpush2.msra.mxu0 0.0
      %1352 = vmatprep.subr.mxu0 0.0
      %1353 = vmatpush2.msra.mxu0 0.0
      %1354 = vmatprep.subr.mxu0 0.0
      %1355 = vmatpush2.msra.mxu0 0.0
      %1356 = vmatprep.subr.mxu0 0.0
      %1357 = vmatpush2.msra.mxu0 0.0
      %1358 = vmatprep.subr.mxu0 0.0
      %1359 = vmatpush2.msra.mxu0 0.0
      %1360 = vmatprep.subr.mxu0 0.0
      %1361 = vmatpush2.msra.mxu0 0.0
      %1362 = vmatprep.subr.mxu0 0.0
      %1363 = vmatpush2.msra.mxu0 0.0
      %1364 = vmatprep.subr.mxu0 0.0
      %1365 = vmatpush2.msra.mxu0 0.0
      %1366 = vmatprep.subr.mxu0 0.0
      %1367 = vmatpush2.msra.mxu0 0.0
      %1368 = vmatprep.subr.mxu0 0.0
      %1369 = vmatpush2.msra.mxu0 0.0
      %1370 = vmatprep.subr.mxu0 0.0
      %1371 = vmatpush2.msra.mxu0 0.0
      %1372 = vmatprep.subr.mxu0 0.0
      %1373 = vmatpush2.msra.mxu0 0.0
      %1374 = vmatprep.subr.mxu0 0.0
      %1375 = vmatpush2.msra.mxu0 0.0
      %1376 = vmatprep.mubr.f32.mxu0 0.0
      %1377 = vmatmul.mubr.f32.gmra.mxu0 %v1304
      %v1378 = vpop.f32.mrf.mxu0
      %v1379 = vadd.f32 0.0, %v1378
      %v1380 = vpop.f32.mrf.mxu0
      %1381 = vmatprep.mubr.f32.mxu0 0.0
      %1382 = vmatmul.mubr.f32.gmra.mxu0 %v1307
      %v1383 = vpop.f32.mrf.mxu0
      %v1384 = vadd.f32 0.0, %v1383
      %v1385 = vpop.f32.mrf.mxu0
      %1386 = vmatprep.mubr.f32.mxu0 0.0
      %1387 = vmatmul.mubr.f32.gmra.mxu0 %v1310
      %v1388 = vpop.f32.mrf.mxu0
      %v1389 = vadd.f32 0.0, %v1388
      %v1390 = vpop.f32.mrf.mxu0
      %1391 = vdwg.mxu0
      %v1392 = vmul.f32 %v1379, 4.3112315e+15
      %v1393 = vmul.f32 %v1384, 4.3112315e+15
      %v1394 = vmul.f32 %v1389, 4.3112315e+15
      %v1395 = vmul.f32 %v1300, %v926
      %v1396 = vmul.f32 %v1301, %v928
      %v1397 = vmul.f32 %v1302, %v930
      %v1399 = vsel %vm931, %v1395, 0
      %v1402 = vsel %vm931, %v1396, 0
      %v1405 = vsel %vm931, %v1397, 0
      %1407 = vmatprep.subr.mxu0 0.0
      %1408 = vmatpush1.msra.mxu0 0.0
      %1409 = vmatprep.subr.mxu0 0.0
      %1410 = vmatpush1.msra.mxu0 0.0
      %1411 = vmatprep.subr.mxu0 0.0
      %1412 = vmatpush1.msra.mxu0 0.0
      %1413 = vmatprep.subr.mxu0 0.0
      %1414 = vmatpush1.msra.mxu0 0.0
      %1415 = vmatprep.subr.mxu0 0.0
      %1416 = vmatpush1.msra.mxu0 0.0
      %1417 = vmatprep.subr.mxu0 0.0
      %1418 = vmatpush1.msra.mxu0 0.0
      %1419 = vmatprep.subr.mxu0 0.0
      %1420 = vmatpush1.msra.mxu0 0.0
      %1421 = vmatprep.subr.mxu0 0.0
      %1422 = vmatpush1.msra.mxu0 0.0
      %1423 = vmatprep.subr.mxu0 0.0
      %1424 = vmatpush1.msra.mxu0 0.0
      %1425 = vmatprep.subr.mxu0 0.0
      %1426 = vmatpush1.msra.mxu0 0.0
      %1427 = vmatprep.subr.mxu0 0.0
      %1428 = vmatpush1.msra.mxu0 %v891
      %1429 = vmatprep.subr.mxu0 0.0
      %1430 = vmatpush1.msra.mxu0 %v890
      %1431 = vmatprep.subr.mxu0 0.0
      %1432 = vmatpush1.msra.mxu0 %v889
      %1433 = vmatprep.subr.mxu0 0.0
      %1434 = vmatpush1.msra.mxu0 %v888
      %1435 = vmatprep.subr.mxu0 0.0
      %1436 = vmatpush1.msra.mxu0 %v887
      %1437 = vmatprep.subr.mxu0 0.0
      %1438 = vmatpush1.msra.mxu0 %v886
      %1439 = vmatprep.subr.mxu0 0.0
      %1440 = vmatpush2.msra.mxu0 0.0
      %1441 = vmatprep.subr.mxu0 0.0
      %1442 = vmatpush2.msra.mxu0 0.0
      %1443 = vmatprep.subr.mxu0 0.0
      %1444 = vmatpush2.msra.mxu0 0.0
      %1445 = vmatprep.subr.mxu0 0.0
      %1446 = vmatpush2.msra.mxu0 0.0
      %1447 = vmatprep.subr.mxu0 0.0
      %1448 = vmatpush2.msra.mxu0 0.0
      %1449 = vmatprep.subr.mxu0 0.0
      %1450 = vmatpush2.msra.mxu0 0.0
      %1451 = vmatprep.subr.mxu0 0.0
      %1452 = vmatpush2.msra.mxu0 0.0
      %1453 = vmatprep.subr.mxu0 0.0
      %1454 = vmatpush2.msra.mxu0 0.0
      %1455 = vmatprep.subr.mxu0 0.0
      %1456 = vmatpush2.msra.mxu0 0.0
      %1457 = vmatprep.subr.mxu0 0.0
      %1458 = vmatpush2.msra.mxu0 0.0
      %1459 = vmatprep.subr.mxu0 0.0
      %1460 = vmatpush2.msra.mxu0 0.0
      %1461 = vmatprep.subr.mxu0 0.0
      %1462 = vmatpush2.msra.mxu0 0.0
      %1463 = vmatprep.subr.mxu0 0.0
      %1464 = vmatpush2.msra.mxu0 0.0
      %1465 = vmatprep.subr.mxu0 0.0
      %1466 = vmatpush2.msra.mxu0 0.0
      %1467 = vmatprep.subr.mxu0 0.0
      %1468 = vmatpush2.msra.mxu0 0.0
      %1469 = vmatprep.subr.mxu0 0.0
      %1470 = vmatpush2.msra.mxu0 0.0
      %1471 = vmatprep.mubr.f32.mxu0 0.0
      %1472 = vmatmul.mubr.f32.gmra.mxu0 %v1399
      %v1473 = vpop.f32.mrf.mxu0
      %v1474 = vadd.f32 0.0, %v1473
      %v1475 = vpop.f32.mrf.mxu0
      %1476 = vmatprep.mubr.f32.mxu0 0.0
      %1477 = vmatmul.mubr.f32.gmra.mxu0 %v1402
      %v1478 = vpop.f32.mrf.mxu0
      %v1479 = vadd.f32 0.0, %v1478
      %v1480 = vpop.f32.mrf.mxu0
      %1481 = vmatprep.mubr.f32.mxu0 0.0
      %1482 = vmatmul.mubr.f32.gmra.mxu0 %v1405
      %v1483 = vpop.f32.mrf.mxu0
      %v1484 = vadd.f32 0.0, %v1483
      %v1485 = vpop.f32.mrf.mxu0
      %1486 = vdwg.mxu0
      %v1487 = vmul.f32 %v1474, 2.3538527e+17
      %v1488 = vmul.f32 %v1479, 2.3538527e+17
      %v1489 = vmul.f32 %v1484, 2.3538527e+17
      %v1490 = vmul.f32 %v1395, %v926
      %v1491 = vmul.f32 %v1396, %v928
      %v1492 = vmul.f32 %v1397, %v930
      %v1494 = vsel %vm931, %v1490, 0
      %v1497 = vsel %vm931, %v1491, 0
      %v1500 = vsel %vm931, %v1492, 0
      %1502 = vmatprep.subr.mxu0 0.0
      %1503 = vmatpush1.msra.mxu0 0.0
      %1504 = vmatprep.subr.mxu0 0.0
      %1505 = vmatpush1.msra.mxu0 0.0
      %1506 = vmatprep.subr.mxu0 0.0
      %1507 = vmatpush1.msra.mxu0 0.0
      %1508 = vmatprep.subr.mxu0 0.0
      %1509 = vmatpush1.msra.mxu0 0.0
      %1510 = vmatprep.subr.mxu0 0.0
      %1511 = vmatpush1.msra.mxu0 0.0
      %1512 = vmatprep.subr.mxu0 0.0
      %1513 = vmatpush1.msra.mxu0 0.0
      %1514 = vmatprep.subr.mxu0 0.0
      %1515 = vmatpush1.msra.mxu0 0.0
      %1516 = vmatprep.subr.mxu0 0.0
      %1517 = vmatpush1.msra.mxu0 0.0
      %1518 = vmatprep.subr.mxu0 0.0
      %1519 = vmatpush1.msra.mxu0 0.0
      %1520 = vmatprep.subr.mxu0 0.0
      %1521 = vmatpush1.msra.mxu0 0.0
      %1522 = vmatprep.subr.mxu0 0.0
      %1523 = vmatpush1.msra.mxu0 %v891
      %1524 = vmatprep.subr.mxu0 0.0
      %1525 = vmatpush1.msra.mxu0 %v890
      %1526 = vmatprep.subr.mxu0 0.0
      %1527 = vmatpush1.msra.mxu0 %v889
      %1528 = vmatprep.subr.mxu0 0.0
      %1529 = vmatpush1.msra.mxu0 %v888
      %1530 = vmatprep.subr.mxu0 0.0
      %1531 = vmatpush1.msra.mxu0 %v887
      %1532 = vmatprep.subr.mxu0 0.0
      %1533 = vmatpush1.msra.mxu0 %v886
      %1534 = vmatprep.subr.mxu0 0.0
      %1535 = vmatpush2.msra.mxu0 0.0
      %1536 = vmatprep.subr.mxu0 0.0
      %1537 = vmatpush2.msra.mxu0 0.0
      %1538 = vmatprep.subr.mxu0 0.0
      %1539 = vmatpush2.msra.mxu0 0.0
      %1540 = vmatprep.subr.mxu0 0.0
      %1541 = vmatpush2.msra.mxu0 0.0
      %1542 = vmatprep.subr.mxu0 0.0
      %1543 = vmatpush2.msra.mxu0 0.0
      %1544 = vmatprep.subr.mxu0 0.0
      %1545 = vmatpush2.msra.mxu0 0.0
      %1546 = vmatprep.subr.mxu0 0.0
      %1547 = vmatpush2.msra.mxu0 0.0
      %1548 = vmatprep.subr.mxu0 0.0
      %1549 = vmatpush2.msra.mxu0 0.0
      %1550 = vmatprep.subr.mxu0 0.0
      %1551 = vmatpush2.msra.mxu0 0.0
      %1552 = vmatprep.subr.mxu0 0.0
      %1553 = vmatpush2.msra.mxu0 0.0
      %1554 = vmatprep.subr.mxu0 0.0
      %1555 = vmatpush2.msra.mxu0 0.0
      %1556 = vmatprep.subr.mxu0 0.0
      %1557 = vmatpush2.msra.mxu0 0.0
      %1558 = vmatprep.subr.mxu0 0.0
      %1559 = vmatpush2.msra.mxu0 0.0
      %1560 = vmatprep.subr.mxu0 0.0
      %1561 = vmatpush2.msra.mxu0 0.0
      %1562 = vmatprep.subr.mxu0 0.0
      %1563 = vmatpush2.msra.mxu0 0.0
      %1564 = vmatprep.subr.mxu0 0.0
      %1565 = vmatpush2.msra.mxu0 0.0
      %1566 = vmatprep.mubr.f32.mxu0 0.0
      %1567 = vmatmul.mubr.f32.gmra.mxu0 %v1494
      %v1568 = vpop.f32.mrf.mxu0
      %v1569 = vadd.f32 0.0, %v1568
      %v1570 = vpop.f32.mrf.mxu0
      %1571 = vmatprep.mubr.f32.mxu0 0.0
      %1572 = vmatmul.mubr.f32.gmra.mxu0 %v1497
      %v1573 = vpop.f32.mrf.mxu0
      %v1574 = vadd.f32 0.0, %v1573
      %v1575 = vpop.f32.mrf.mxu0
      %1576 = vmatprep.mubr.f32.mxu0 0.0
      %1577 = vmatmul.mubr.f32.gmra.mxu0 %v1500
      %v1578 = vpop.f32.mrf.mxu0
      %v1579 = vadd.f32 0.0, %v1578
      %v1580 = vpop.f32.mrf.mxu0
      %1581 = vdwg.mxu0
      %v1582 = vmul.f32 %v1569, 2.3538527e+17
      %v1583 = vmul.f32 %v1574, 2.3538527e+17
      %v1584 = vmul.f32 %v1579, 2.3538527e+17
      %v1585 = vmul.f32 %v1490, %v926
      %v1586 = vmul.f32 %v1491, %v928
      %v1587 = vmul.f32 %v1492, %v930
      %v1589 = vsel %vm931, %v1585, 0
      %v1592 = vsel %vm931, %v1586, 0
      %v1595 = vsel %vm931, %v1587, 0
      %1597 = vmatprep.subr.mxu0 0.0
      %1598 = vmatpush1.msra.mxu0 0.0
      %1599 = vmatprep.subr.mxu0 0.0
      %1600 = vmatpush1.msra.mxu0 0.0
      %1601 = vmatprep.subr.mxu0 0.0
      %1602 = vmatpush1.msra.mxu0 0.0
      %1603 = vmatprep.subr.mxu0 0.0
      %1604 = vmatpush1.msra.mxu0 0.0
      %1605 = vmatprep.subr.mxu0 0.0
      %1606 = vmatpush1.msra.mxu0 0.0
      %1607 = vmatprep.subr.mxu0 0.0
      %1608 = vmatpush1.msra.mxu0 0.0
      %1609 = vmatprep.subr.mxu0 0.0
      %1610 = vmatpush1.msra.mxu0 0.0
      %1611 = vmatprep.subr.mxu0 0.0
      %1612 = vmatpush1.msra.mxu0 0.0
      %1613 = vmatprep.subr.mxu0 0.0
      %1614 = vmatpush1.msra.mxu0 0.0
      %1615 = vmatprep.subr.mxu0 0.0
      %1616 = vmatpush1.msra.mxu0 0.0
      %1617 = vmatprep.subr.mxu0 0.0
      %1618 = vmatpush1.msra.mxu0 %v891
      %1619 = vmatprep.subr.mxu0 0.0
      %1620 = vmatpush1.msra.mxu0 %v890
      %1621 = vmatprep.subr.mxu0 0.0
      %1622 = vmatpush1.msra.mxu0 %v889
      %1623 = vmatprep.subr.mxu0 0.0
      %1624 = vmatpush1.msra.mxu0 %v888
      %1625 = vmatprep.subr.mxu0 0.0
      %1626 = vmatpush1.msra.mxu0 %v887
      %1627 = vmatprep.subr.mxu0 0.0
      %1628 = vmatpush1.msra.mxu0 %v886
      %1629 = vmatprep.subr.mxu0 0.0
      %1630 = vmatpush2.msra.mxu0 0.0
      %1631 = vmatprep.subr.mxu0 0.0
      %1632 = vmatpush2.msra.mxu0 0.0
      %1633 = vmatprep.subr.mxu0 0.0
      %1634 = vmatpush2.msra.mxu0 0.0
      %1635 = vmatprep.subr.mxu0 0.0
      %1636 = vmatpush2.msra.mxu0 0.0
      %1637 = vmatprep.subr.mxu0 0.0
      %1638 = vmatpush2.msra.mxu0 0.0
      %1639 = vmatprep.subr.mxu0 0.0
      %1640 = vmatpush2.msra.mxu0 0.0
      %1641 = vmatprep.subr.mxu0 0.0
      %1642 = vmatpush2.msra.mxu0 0.0
      %1643 = vmatprep.subr.mxu0 0.0
      %1644 = vmatpush2.msra.mxu0 0.0
      %1645 = vmatprep.subr.mxu0 0.0
      %1646 = vmatpush2.msra.mxu0 0.0
      %1647 = vmatprep.subr.mxu0 0.0
      %1648 = vmatpush2.msra.mxu0 0.0
      %1649 = vmatprep.subr.mxu0 0.0
      %1650 = vmatpush2.msra.mxu0 0.0
      %1651 = vmatprep.subr.mxu0 0.0
      %1652 = vmatpush2.msra.mxu0 0.0
      %1653 = vmatprep.subr.mxu0 0.0
      %1654 = vmatpush2.msra.mxu0 0.0
      %1655 = vmatprep.subr.mxu0 0.0
      %1656 = vmatpush2.msra.mxu0 0.0
      %1657 = vmatprep.subr.mxu0 0.0
      %1658 = vmatpush2.msra.mxu0 0.0
      %1659 = vmatprep.subr.mxu0 0.0
      %1660 = vmatpush2.msra.mxu0 0.0
      %1661 = vmatprep.mubr.f32.mxu0 0.0
      %1662 = vmatmul.mubr.f32.gmra.mxu0 %v1589
      %v1663 = vpop.f32.mrf.mxu0
      %v1664 = vadd.f32 0.0, %v1663
      %v1665 = vpop.f32.mrf.mxu0
      %1666 = vmatprep.mubr.f32.mxu0 0.0
      %1667 = vmatmul.mubr.f32.gmra.mxu0 %v1592
      %v1668 = vpop.f32.mrf.mxu0
      %v1669 = vadd.f32 0.0, %v1668
      %v1670 = vpop.f32.mrf.mxu0
      %1671 = vmatprep.mubr.f32.mxu0 0.0
      %1672 = vmatmul.mubr.f32.gmra.mxu0 %v1595
      %v1673 = vpop.f32.mrf.mxu0
      %v1674 = vadd.f32 0.0, %v1673
      %v1675 = vpop.f32.mrf.mxu0
      %1676 = vdwg.mxu0
      %v1677 = vmul.f32 %v1664, 4.3112315e+15
      %v1678 = vmul.f32 %v1669, 4.3112315e+15
      %v1679 = vmul.f32 %v1674, 4.3112315e+15
      %v1680 = vmul.f32 %v1585, %v926
      %v1681 = vmul.f32 %v1586, %v928
      %v1682 = vmul.f32 %v1587, %v930
      %v1684 = vsel %vm931, %v1680, 0
      %v1687 = vsel %vm931, %v1681, 0
      %v1690 = vsel %vm931, %v1682, 0
      %1692 = vmatprep.subr.mxu0 0.0
      %1693 = vmatpush1.msra.mxu0 0.0
      %1694 = vmatprep.subr.mxu0 0.0
      %1695 = vmatpush1.msra.mxu0 0.0
      %1696 = vmatprep.subr.mxu0 0.0
      %1697 = vmatpush1.msra.mxu0 0.0
      %1698 = vmatprep.subr.mxu0 0.0
      %1699 = vmatpush1.msra.mxu0 0.0
      %1700 = vmatprep.subr.mxu0 0.0
      %1701 = vmatpush1.msra.mxu0 0.0
      %1702 = vmatprep.subr.mxu0 0.0
      %1703 = vmatpush1.msra.mxu0 0.0
      %1704 = vmatprep.subr.mxu0 0.0
      %1705 = vmatpush1.msra.mxu0 0.0
      %1706 = vmatprep.subr.mxu0 0.0
      %1707 = vmatpush1.msra.mxu0 0.0
      %1708 = vmatprep.subr.mxu0 0.0
      %1709 = vmatpush1.msra.mxu0 0.0
      %1710 = vmatprep.subr.mxu0 0.0
      %1711 = vmatpush1.msra.mxu0 0.0
      %1712 = vmatprep.subr.mxu0 0.0
      %1713 = vmatpush1.msra.mxu0 %v891
      %1714 = vmatprep.subr.mxu0 0.0
      %1715 = vmatpush1.msra.mxu0 %v890
      %1716 = vmatprep.subr.mxu0 0.0
      %1717 = vmatpush1.msra.mxu0 %v889
      %1718 = vmatprep.subr.mxu0 0.0
      %1719 = vmatpush1.msra.mxu0 %v888
      %1720 = vmatprep.subr.mxu0 0.0
      %1721 = vmatpush1.msra.mxu0 %v887
      %1722 = vmatprep.subr.mxu0 0.0
      %1723 = vmatpush1.msra.mxu0 %v886
      %1724 = vmatprep.subr.mxu0 0.0
      %1725 = vmatpush2.msra.mxu0 0.0
      %1726 = vmatprep.subr.mxu0 0.0
      %1727 = vmatpush2.msra.mxu0 0.0
      %1728 = vmatprep.subr.mxu0 0.0
      %1729 = vmatpush2.msra.mxu0 0.0
      %1730 = vmatprep.subr.mxu0 0.0
      %1731 = vmatpush2.msra.mxu0 0.0
      %1732 = vmatprep.subr.mxu0 0.0
      %1733 = vmatpush2.msra.mxu0 0.0
      %1734 = vmatprep.subr.mxu0 0.0
      %1735 = vmatpush2.msra.mxu0 0.0
      %1736 = vmatprep.subr.mxu0 0.0
      %1737 = vmatpush2.msra.mxu0 0.0
      %1738 = vmatprep.subr.mxu0 0.0
      %1739 = vmatpush2.msra.mxu0 0.0
      %1740 = vmatprep.subr.mxu0 0.0
      %1741 = vmatpush2.msra.mxu0 0.0
      %1742 = vmatprep.subr.mxu0 0.0
      %1743 = vmatpush2.msra.mxu0 0.0
      %1744 = vmatprep.subr.mxu0 0.0
      %1745 = vmatpush2.msra.mxu0 0.0
      %1746 = vmatprep.subr.mxu0 0.0
      %1747 = vmatpush2.msra.mxu0 0.0
      %1748 = vmatprep.subr.mxu0 0.0
      %1749 = vmatpush2.msra.mxu0 0.0
      %1750 = vmatprep.subr.mxu0 0.0
      %1751 = vmatpush2.msra.mxu0 0.0
      %1752 = vmatprep.subr.mxu0 0.0
      %1753 = vmatpush2.msra.mxu0 0.0
      %1754 = vmatprep.subr.mxu0 0.0
      %1755 = vmatpush2.msra.mxu0 0.0
      %1756 = vmatprep.mubr.f32.mxu0 0.0
      %1757 = vmatmul.mubr.f32.gmra.mxu0 %v1684
      %v1758 = vpop.f32.mrf.mxu0
      %v1759 = vadd.f32 0.0, %v1758
      %v1760 = vpop.f32.mrf.mxu0
      %1761 = vmatprep.mubr.f32.mxu0 0.0
      %1762 = vmatmul.mubr.f32.gmra.mxu0 %v1687
      %v1763 = vpop.f32.mrf.mxu0
      %v1764 = vadd.f32 0.0, %v1763
      %v1765 = vpop.f32.mrf.mxu0
      %1766 = vmatprep.mubr.f32.mxu0 0.0
      %1767 = vmatmul.mubr.f32.gmra.mxu0 %v1690
      %v1768 = vpop.f32.mrf.mxu0
      %v1769 = vadd.f32 0.0, %v1768
      %v1770 = vpop.f32.mrf.mxu0
      %1771 = vdwg.mxu0
      %v1772 = vmul.f32 %v1759, 1.4462571e+12
      %v1773 = vmul.f32 %v1764, 1.4462571e+12
      %v1774 = vmul.f32 %v1769, 1.4462571e+12
      %v1775 = vmul.f32 %v1680, %v926
      %v1776 = vmul.f32 %v1681, %v928
      %v1777 = vmul.f32 %v1682, %v930
      %v1779 = vsel %vm931, %v1775, 0
      %v1782 = vsel %vm931, %v1776, 0
      %v1785 = vsel %vm931, %v1777, 0
      %1787 = vmatprep.subr.mxu0 0.0
      %1788 = vmatpush1.msra.mxu0 0.0
      %1789 = vmatprep.subr.mxu0 0.0
      %1790 = vmatpush1.msra.mxu0 0.0
      %1791 = vmatprep.subr.mxu0 0.0
      %1792 = vmatpush1.msra.mxu0 0.0
      %1793 = vmatprep.subr.mxu0 0.0
      %1794 = vmatpush1.msra.mxu0 0.0
      %1795 = vmatprep.subr.mxu0 0.0
      %1796 = vmatpush1.msra.mxu0 0.0
      %1797 = vmatprep.subr.mxu0 0.0
      %1798 = vmatpush1.msra.mxu0 0.0
      %1799 = vmatprep.subr.mxu0 0.0
      %1800 = vmatpush1.msra.mxu0 0.0
      %1801 = vmatprep.subr.mxu0 0.0
      %1802 = vmatpush1.msra.mxu0 0.0
      %1803 = vmatprep.subr.mxu0 0.0
      %1804 = vmatpush1.msra.mxu0 0.0
      %1805 = vmatprep.subr.mxu0 0.0
      %1806 = vmatpush1.msra.mxu0 0.0
      %1807 = vmatprep.subr.mxu0 0.0
      %1808 = vmatpush1.msra.mxu0 %v891
      %1809 = vmatprep.subr.mxu0 0.0
      %1810 = vmatpush1.msra.mxu0 %v890
      %1811 = vmatprep.subr.mxu0 0.0
      %1812 = vmatpush1.msra.mxu0 %v889
      %1813 = vmatprep.subr.mxu0 0.0
      %1814 = vmatpush1.msra.mxu0 %v888
      %1815 = vmatprep.subr.mxu0 0.0
      %1816 = vmatpush1.msra.mxu0 %v887
      %1817 = vmatprep.subr.mxu0 0.0
      %1818 = vmatpush1.msra.mxu0 %v886
      %1819 = vmatprep.subr.mxu0 0.0
      %1820 = vmatpush2.msra.mxu0 0.0
      %1821 = vmatprep.subr.mxu0 0.0
      %1822 = vmatpush2.msra.mxu0 0.0
      %1823 = vmatprep.subr.mxu0 0.0
      %1824 = vmatpush2.msra.mxu0 0.0
      %1825 = vmatprep.subr.mxu0 0.0
      %1826 = vmatpush2.msra.mxu0 0.0
      %1827 = vmatprep.subr.mxu0 0.0
      %1828 = vmatpush2.msra.mxu0 0.0
      %1829 = vmatprep.subr.mxu0 0.0
      %1830 = vmatpush2.msra.mxu0 0.0
      %1831 = vmatprep.subr.mxu0 0.0
      %1832 = vmatpush2.msra.mxu0 0.0
      %1833 = vmatprep.subr.mxu0 0.0
      %1834 = vmatpush2.msra.mxu0 0.0
      %1835 = vmatprep.subr.mxu0 0.0
      %1836 = vmatpush2.msra.mxu0 0.0
      %1837 = vmatprep.subr.mxu0 0.0
      %1838 = vmatpush2.msra.mxu0 0.0
      %1839 = vmatprep.subr.mxu0 0.0
      %1840 = vmatpush2.msra.mxu0 0.0
      %1841 = vmatprep.subr.mxu0 0.0
      %1842 = vmatpush2.msra.mxu0 0.0
      %1843 = vmatprep.subr.mxu0 0.0
      %1844 = vmatpush2.msra.mxu0 0.0
      %1845 = vmatprep.subr.mxu0 0.0
      %1846 = vmatpush2.msra.mxu0 0.0
      %1847 = vmatprep.subr.mxu0 0.0
      %1848 = vmatpush2.msra.mxu0 0.0
      %1849 = vmatprep.subr.mxu0 0.0
      %1850 = vmatpush2.msra.mxu0 0.0
      %1851 = vmatprep.mubr.f32.mxu0 0.0
      %1852 = vmatmul.mubr.f32.gmra.mxu0 %v1779
      %v1853 = vpop.f32.mrf.mxu0
      %v1854 = vadd.f32 0.0, %v1853
      %v1855 = vpop.f32.mrf.mxu0
      %1856 = vmatprep.mubr.f32.mxu0 0.0
      %1857 = vmatmul.mubr.f32.gmra.mxu0 %v1782
      %v1858 = vpop.f32.mrf.mxu0
      %v1859 = vadd.f32 0.0, %v1858
      %v1860 = vpop.f32.mrf.mxu0
      %1861 = vmatprep.mubr.f32.mxu0 0.0
      %1862 = vmatmul.mubr.f32.gmra.mxu0 %v1785
      %v1863 = vpop.f32.mrf.mxu0
      %v1864 = vadd.f32 0.0, %v1863
      %v1865 = vpop.f32.mrf.mxu0
      %1866 = vdwg.mxu0
      %v1867 = vmul.f32 %v1854, 8886111.0
      %v1868 = vmul.f32 %v1859, 8886111.0
      %v1869 = vmul.f32 %v1864, 8886111.0
      %v1870 = vmul.f32 %v1775, %v926
      %v1871 = vmul.f32 %v1776, %v928
      %v1872 = vmul.f32 %v1777, %v930
      %v1874 = vsel %vm931, %v1870, 0
      %v1877 = vsel %vm931, %v1871, 0
      %v1880 = vsel %vm931, %v1872, 0
      %1882 = vmatprep.subr.mxu0 0.0
      %1883 = vmatpush1.msra.mxu0 0.0
      %1884 = vmatprep.subr.mxu0 0.0
      %1885 = vmatpush1.msra.mxu0 0.0
      %1886 = vmatprep.subr.mxu0 0.0
      %1887 = vmatpush1.msra.mxu0 0.0
      %1888 = vmatprep.subr.mxu0 0.0
      %1889 = vmatpush1.msra.mxu0 0.0
      %1890 = vmatprep.subr.mxu0 0.0
      %1891 = vmatpush1.msra.mxu0 0.0
      %1892 = vmatprep.subr.mxu0 0.0
      %1893 = vmatpush1.msra.mxu0 0.0
      %1894 = vmatprep.subr.mxu0 0.0
      %1895 = vmatpush1.msra.mxu0 0.0
      %1896 = vmatprep.subr.mxu0 0.0
      %1897 = vmatpush1.msra.mxu0 0.0
      %1898 = vmatprep.subr.mxu0 0.0
      %1899 = vmatpush1.msra.mxu0 0.0
      %1900 = vmatprep.subr.mxu0 0.0
      %1901 = vmatpush1.msra.mxu0 0.0
      %1902 = vmatprep.subr.mxu0 0.0
      %1903 = vmatpush1.msra.mxu0 %v891
      %1904 = vmatprep.subr.mxu0 0.0
      %1905 = vmatpush1.msra.mxu0 %v890
      %1906 = vmatprep.subr.mxu0 0.0
      %1907 = vmatpush1.msra.mxu0 %v889
      %1908 = vmatprep.subr.mxu0 0.0
      %1909 = vmatpush1.msra.mxu0 %v888
      %1910 = vmatprep.subr.mxu0 0.0
      %1911 = vmatpush1.msra.mxu0 %v887
      %1912 = vmatprep.subr.mxu0 0.0
      %1913 = vmatpush1.msra.mxu0 %v886
      %1914 = vmatprep.subr.mxu0 0.0
      %1915 = vmatpush2.msra.mxu0 0.0
      %1916 = vmatprep.subr.mxu0 0.0
      %1917 = vmatpush2.msra.mxu0 0.0
      %1918 = vmatprep.subr.mxu0 0.0
      %1919 = vmatpush2.msra.mxu0 0.0
      %1920 = vmatprep.subr.mxu0 0.0
      %1921 = vmatpush2.msra.mxu0 0.0
      %1922 = vmatprep.subr.mxu0 0.0
      %1923 = vmatpush2.msra.mxu0 0.0
      %1924 = vmatprep.subr.mxu0 0.0
      %1925 = vmatpush2.msra.mxu0 0.0
      %1926 = vmatprep.subr.mxu0 0.0
      %1927 = vmatpush2.msra.mxu0 0.0
      %1928 = vmatprep.subr.mxu0 0.0
      %1929 = vmatpush2.msra.mxu0 0.0
      %1930 = vmatprep.subr.mxu0 0.0
      %1931 = vmatpush2.msra.mxu0 0.0
      %1932 = vmatprep.subr.mxu0 0.0
      %1933 = vmatpush2.msra.mxu0 0.0
      %1934 = vmatprep.subr.mxu0 0.0
      %1935 = vmatpush2.msra.mxu0 0.0
      %1936 = vmatprep.subr.mxu0 0.0
      %1937 = vmatpush2.msra.mxu0 0.0
      %1938 = vmatprep.subr.mxu0 0.0
      %1939 = vmatpush2.msra.mxu0 0.0
      %1940 = vmatprep.subr.mxu0 0.0
      %1941 = vmatpush2.msra.mxu0 0.0
      %1942 = vmatprep.subr.mxu0 0.0
      %1943 = vmatpush2.msra.mxu0 0.0
      %1944 = vmatprep.subr.mxu0 0.0
      %1945 = vmatpush2.msra.mxu0 0.0
      %1946 = vmatprep.mubr.f32.mxu0 0.0
      %1947 = vmatmul.mubr.f32.gmra.mxu0 %v1874
      %v1948 = vpop.f32.mrf.mxu0
      %v1949 = vadd.f32 0.0, %v1948
      %v1950 = vpop.f32.mrf.mxu0
      %1951 = vmatprep.mubr.f32.mxu0 0.0
      %1952 = vmatmul.mubr.f32.gmra.mxu0 %v1877
      %v1953 = vpop.f32.mrf.mxu0
      %v1954 = vadd.f32 0.0, %v1953
      %v1955 = vpop.f32.mrf.mxu0
      %1956 = vmatprep.mubr.f32.mxu0 0.0
      %1957 = vmatmul.mubr.f32.gmra.mxu0 %v1880
      %v1958 = vpop.f32.mrf.mxu0
      %v1959 = vadd.f32 0.0, %v1958
      %v1960 = vpop.f32.mrf.mxu0
      %1961 = vdwg.mxu0
      %1965 = vrot.lane.b32.xlu0 %v1097, 3
      %v1966 = vpop.permute.xlu0 %1965
      %1967 = vrot.lane.b32.xlu0 %v1102, 3
      %v1968 = vpop.permute.xlu0 %1967
      %1969 = vrot.lane.b32.xlu0 %v1107, 3
      %v1970 = vpop.permute.xlu0 %1969
      %1977 = vrot.lane.b32.xlu0 %v1202, 6
      %v1978 = vpop.permute.xlu0 %1977
      %1979 = vrot.lane.b32.xlu0 %v1203, 6
      %v1980 = vpop.permute.xlu0 %1979
      %1981 = vrot.lane.b32.xlu0 %v1204, 6
      %v1982 = vpop.permute.xlu0 %1981
      %1989 = vrot.lane.b32.xlu0 %v1297, 9
      %v1990 = vpop.permute.xlu0 %1989
      %1991 = vrot.lane.b32.xlu0 %v1298, 9
      %v1992 = vpop.permute.xlu0 %1991
      %1993 = vrot.lane.b32.xlu0 %v1299, 9
      %v1994 = vpop.permute.xlu0 %1993
      %2001 = vrot.lane.b32.xlu0 %v1392, 12
      %v2002 = vpop.permute.xlu0 %2001
      %2003 = vrot.lane.b32.xlu0 %v1393, 12
      %v2004 = vpop.permute.xlu0 %2003
      %2005 = vrot.lane.b32.xlu0 %v1394, 12
      %v2006 = vpop.permute.xlu0 %2005
      %2013 = vrot.lane.b32.xlu0 %v1487, 15
      %v2014 = vpop.permute.xlu0 %2013
      %2015 = vrot.lane.b32.xlu0 %v1488, 15
      %v2016 = vpop.permute.xlu0 %2015
      %2017 = vrot.lane.b32.xlu0 %v1489, 15
      %v2018 = vpop.permute.xlu0 %2017
      %2025 = vrot.lane.b32.xlu0 %v1582, 18
      %v2026 = vpop.permute.xlu0 %2025
      %2027 = vrot.lane.b32.xlu0 %v1583, 18
      %v2028 = vpop.permute.xlu0 %2027
      %2029 = vrot.lane.b32.xlu0 %v1584, 18
      %v2030 = vpop.permute.xlu0 %2029
      %2037 = vrot.lane.b32.xlu0 %v1677, 21
      %v2038 = vpop.permute.xlu0 %2037
      %2039 = vrot.lane.b32.xlu0 %v1678, 21
      %v2040 = vpop.permute.xlu0 %2039
      %2041 = vrot.lane.b32.xlu0 %v1679, 21
      %v2042 = vpop.permute.xlu0 %2041
      %2049 = vrot.lane.b32.xlu0 %v1772, 24
      %v2050 = vpop.permute.xlu0 %2049
      %2051 = vrot.lane.b32.xlu0 %v1773, 24
      %v2052 = vpop.permute.xlu0 %2051
      %2053 = vrot.lane.b32.xlu0 %v1774, 24
      %v2054 = vpop.permute.xlu0 %2053
      %2061 = vrot.lane.b32.xlu0 %v1867, 27
      %v2062 = vpop.permute.xlu0 %2061
      %2063 = vrot.lane.b32.xlu0 %v1868, 27
      %v2064 = vpop.permute.xlu0 %2063
      %2065 = vrot.lane.b32.xlu0 %v1869, 27
      %v2066 = vpop.permute.xlu0 %2065
      %2073 = vrot.lane.b32.xlu0 %v1949, 30
      %v2074 = vpop.permute.xlu0 %2073
      %2075 = vrot.lane.b32.xlu0 %v1954, 30
      %v2076 = vpop.permute.xlu0 %2075
      %2077 = vrot.lane.b32.xlu0 %v1959, 30
      %v2078 = vpop.permute.xlu0 %2077
      %vm2082 = vcmask 23552
      %v2083 = vsel %vm2082, %v1008, %v1966
      %v2084 = vsel %vm2082, %v1013, %v1968
      %v2085 = vsel %vm2082, %v1018, %v1970
      %vm2086 = vcmask 48128
      %v2087 = vsel %vm2086, %v2083, %v1978
      %v2088 = vsel %vm2086, %v2084, %v1980
      %v2089 = vsel %vm2086, %v2085, %v1982
      %vm2090 = vcmask 72704
      %v2091 = vsel %vm2090, %v2087, %v1990
      %v2092 = vsel %vm2090, %v2088, %v1992
      %v2093 = vsel %vm2090, %v2089, %v1994
      %vm2094 = vcmask 97280
      %v2095 = vsel %vm2094, %v2091, %v2002
      %v2096 = vsel %vm2094, %v2092, %v2004
      %v2097 = vsel %vm2094, %v2093, %v2006
      %vm2098 = vcmask 121856
      %v2099 = vsel %vm2098, %v2095, %v2014
      %v2100 = vsel %vm2098, %v2096, %v2016
      %v2101 = vsel %vm2098, %v2097, %v2018
      %vm2102 = vcmask 146432
      %v2103 = vsel %vm2102, %v2099, %v2026
      %v2104 = vsel %vm2102, %v2100, %v2028
      %v2105 = vsel %vm2102, %v2101, %v2030
      %vm2106 = vcmask 171008
      %v2107 = vsel %vm2106, %v2103, %v2038
      %v2108 = vsel %vm2106, %v2104, %v2040
      %v2109 = vsel %vm2106, %v2105, %v2042
      %vm2110 = vcmask 195584
      %v2111 = vsel %vm2110, %v2107, %v2050
      %v2112 = vsel %vm2110, %v2108, %v2052
      %v2113 = vsel %vm2110, %v2109, %v2054
      %vm2114 = vcmask 220160
      %v2115 = vsel %vm2114, %v2111, %v2062
      %v2116 = vsel %vm2114, %v2112, %v2064
      %v2117 = vsel %vm2114, %v2113, %v2066
      %vm2118 = vcmask 244736
      %v2119 = vsel %vm2118, %v2115, %v2074
      %v2120 = vsel %vm2118, %v2116, %v2076
      %v2121 = vsel %vm2118, %v2117, %v2078
      %v2122 = vmax.f32 %v2119, 1e-10
      %v2123 = vmax.f32 %v2120, 1e-10
      %v2124 = vmax.f32 %v2121, 1e-10
      %v2125 = vlog2.pop %v2122
      %v2126 = vmul.f32 %v2125, 0.6931472
      %v2127 = vlog2.pop %v2123
      %v2128 = vmul.f32 %v2127, 0.6931472
      %v2129 = vlog2.pop %v2124
      %v2130 = vmul.f32 %v2129, 0.6931472
      %v2131 = vld [vmem:[%s304] sm:$0x7]
      %v2133 = vsel %vm2110, %v2131, 0
      %2135 = vmatprep.subr.mxu0 0.0
      %2136 = vmatpush1.msra.mxu0 0.0
      %2137 = vmatprep.subr.mxu0 0.0
      %2138 = vmatpush1.msra.mxu0 0.0
      %2139 = vmatprep.subr.mxu0 0.0
      %2140 = vmatpush1.msra.mxu0 0.0
      %2141 = vmatprep.subr.mxu0 0.0
      %2142 = vmatpush1.msra.mxu0 0.0
      %2143 = vmatprep.subr.mxu0 0.0
      %2144 = vmatpush1.msra.mxu0 0.0
      %2145 = vmatprep.subr.mxu0 0.0
      %2146 = vmatpush1.msra.mxu0 0.0
      %2147 = vmatprep.subr.mxu0 0.0
      %2148 = vmatpush1.msra.mxu0 0.0
      %2149 = vmatprep.subr.mxu0 0.0
      %2150 = vmatpush1.msra.mxu0 0.0
      %2151 = vmatprep.subr.mxu0 0.0
      %2152 = vmatpush1.msra.mxu0 0.0
      %2153 = vmatprep.subr.mxu0 0.0
      %2154 = vmatpush1.msra.mxu0 0.0
      %2155 = vmatprep.subr.mxu0 0.0
      %2156 = vmatpush1.msra.mxu0 0.0
      %2157 = vmatprep.subr.mxu0 0.0
      %2158 = vmatpush1.msra.mxu0 0.0
      %2159 = vmatprep.subr.mxu0 0.0
      %2160 = vmatpush1.msra.mxu0 0.0
      %2161 = vmatprep.subr.mxu0 0.0
      %2162 = vmatpush1.msra.mxu0 %v2130
      %2163 = vmatprep.subr.mxu0 0.0
      %2164 = vmatpush1.msra.mxu0 %v2128
      %2165 = vmatprep.subr.mxu0 0.0
      %2166 = vmatpush1.msra.mxu0 %v2126
      %2167 = vmatprep.subr.mxu0 0.0
      %2168 = vmatpush2.msra.mxu0 0.0
      %2169 = vmatprep.subr.mxu0 0.0
      %2170 = vmatpush2.msra.mxu0 0.0
      %2171 = vmatprep.subr.mxu0 0.0
      %2172 = vmatpush2.msra.mxu0 0.0
      %2173 = vmatprep.subr.mxu0 0.0
      %2174 = vmatpush2.msra.mxu0 0.0
      %2175 = vmatprep.subr.mxu0 0.0
      %2176 = vmatpush2.msra.mxu0 0.0
      %2177 = vmatprep.subr.mxu0 0.0
      %2178 = vmatpush2.msra.mxu0 0.0
      %2179 = vmatprep.subr.mxu0 0.0
      %2180 = vmatpush2.msra.mxu0 0.0
      %2181 = vmatprep.subr.mxu0 0.0
      %2182 = vmatpush2.msra.mxu0 0.0
      %2183 = vmatprep.subr.mxu0 0.0
      %2184 = vmatpush2.msra.mxu0 0.0
      %2185 = vmatprep.subr.mxu0 0.0
      %2186 = vmatpush2.msra.mxu0 0.0
      %2187 = vmatprep.subr.mxu0 0.0
      %2188 = vmatpush2.msra.mxu0 0.0
      %2189 = vmatprep.subr.mxu0 0.0
      %2190 = vmatpush2.msra.mxu0 0.0
      %2191 = vmatprep.subr.mxu0 0.0
      %2192 = vmatpush2.msra.mxu0 0.0
      %2193 = vmatprep.subr.mxu0 0.0
      %2194 = vmatpush2.msra.mxu0 0.0
      %2195 = vmatprep.subr.mxu0 0.0
      %2196 = vmatpush2.msra.mxu0 0.0
      %2197 = vmatprep.subr.mxu0 0.0
      %2198 = vmatpush2.msra.mxu0 0.0
      %2199 = vmatprep.mubr.f32.mxu0 0.0
      %2200 = vmatmul.mubr.f32.gmra.mxu0 %v2133
      %v2201 = vpop.f32.mrf.mxu0
      %v2202 = vadd.f32 0.0, %v2201
      %v2203 = vpop.f32.mrf.mxu0
      %2204 = vdwg.mxu0
      %vm2205 = vcmask 264192
      %2206 = vst.msk [vmem:[%s313] sm:$0x7] %vm2205, %v2202
      %p2207 = scmp.lt.s32.totalorder %s18, 1
      %s2208 = scalar_select %p2207, %s18, 1
      %s2209 = smul.addr %s2208, 4
      %s2210 = scalar_lea.vmem %s7, %s2209
      // Predicated region
      $region49: #{cknrm_forward.1} parent=47 // pred_check
        %p2211 = pneg %p198
      $region50: #{cknrm_forward.1} parent=47 // pred_check_branch
        %2213 = sbr.rel (%p2211) target = $region52
      $region51: #{cknrm_forward.1} parent=47 // pred_region
        _
      $region52: #{cknrm_forward.1} parent=47 // pred_fallthru
        _
    $region48: #{cknrm_forward.1} parent=5 // pred_fallthru
      _
    %p2214 = scmp.le.s32.totalorder 2, %s13
    // Predicated region
    $region53: #{cknrm_forward.1} parent=5 // pred_check
      %p2215 = pneg %p2214
    $region54: #{cknrm_forward.1} parent=5 // pred_check_branch
      %2217 = sbr.rel (%p2215) target = $region56
    $region55: #{cknrm_forward.1} parent=5 // pred_region
      %s2218 = ssub.s32 %s13, 2
      // Predicated region
      $region57: #{cknrm_forward.1} parent=55 // pred_check
        %p2219 = pneg %p204
      $region58: #{cknrm_forward.1} parent=55 // pred_check_branch
        %2221 = sbr.rel (%p2219) target = $region60
      $region59: #{cknrm_forward.1} parent=55 // pred_region
        %p2222 = scmp.lt.s32.totalorder %s19, 1
        %s2223 = scalar_select %p2222, %s19, 1
        %s2224 = smul.addr %s2223, 4
        %s2225 = scalar_lea.vmem %s7, %s2224
      $region60: #{cknrm_forward.1} parent=55 // pred_fallthru
        _
    $region56: #{cknrm_forward.1} parent=5 // pred_fallthru
      _
  $region6: #{cknrm_forward.1} parent=0 // loop_footer
    %s17 = sadd.s32 1, %s13
  $region7: #{cknrm_forward.1} parent=0 // loop_footer_branch
    %12 = sbr.rel target = $region3
  $region8: #{cknrm_forward.1} parent=0 // loop_exit
    _

</llo_original>
